<compile_context>
chip_gen: v6e
topology: v6e:2x2x1
jax: 0.10.0
libtpu: 0.0.40
codegen_flags: <defaults>
</compile_context>

<pallas_src>
import functools

import jax
import jax.numpy as jnp
from jax import lax
from jax.experimental import pallas as pl
from jax.experimental.pallas import tpu as pltpu

AGGREGATORS = ("mean", "min", "max", "std")
SCALERS = ("identity", "amplification", "attenuation")


def _round_up(v, m):
    return (v + m - 1) // m * m


def _vmem_capacity_bytes():
    try:
        info = pltpu.get_tpu_info()
        for name in ("vmem_capacity_bytes", "vmem_size_bytes", "vmem_bytes"):
            v = getattr(info, name, None)
            if v:
                return int(v)
    except Exception:
        pass
    return 64 * 1024 * 1024          # conservative default (v7x per-TC VMEM)


def _pna_kernel(blk_lo_ref, nblk_ref,                       # scalar prefetch (SMEM)
                x_ref, idxr_ref, idxc_ref, h_ref, b_ref,    # inputs (VMEM)
                out_ref,                                     # output (VMEM)
                acc_ref, mx_ref, mn_ref,                     # scratch (VMEM)
                *, n_tile, e_tile, chunk, d, dr, outp, avg_log):
    ni = pl.program_id(0)            # node-tile index   (parallel)
    ei = pl.program_id(1)            # edge-step index   (reduction, last)
    node_off = ni * n_tile

    # ---- init accumulators on first edge step --------------------------------
    @pl.when(ei == 0)
    def _():
        acc_ref[...] = jnp.zeros_like(acc_ref)
        mx_ref[...] = jnp.full(mx_ref.shape, -jnp.inf, jnp.float32)
        mn_ref[...] = jnp.full(mn_ref.shape, jnp.inf, jnp.float32)

    # Edges are sorted by destination node: this node tile owns nblk[ni]
    # consecutive edge blocks starting at blk_lo[ni].  Steps past that range
    # map to the same block (no DMA) and skip all compute.
    @pl.when(ei < nblk_ref[ni])
    def _():
        xt = x_ref[...].astype(jnp.float32)                    # [E_t, D]

        # one-hot scatter mask (nodes on sublanes, edges on lanes)
        rows = lax.broadcasted_iota(jnp.int32, (n_tile, e_tile), 0) + node_off
        mask = (rows == idxr_ref[...]).astype(jnp.float32)     # [N_t, E_t]

        # fused segment sum / sum-of-squares / count in ONE MXU matmul:
        # rhs lanes = [ x | x*x | 1 | 0-pad ]  (padded to a 128 multiple)
        tail = (lax.broadcasted_iota(jnp.int32, (e_tile, dr - 2 * d), 1) == 0
                ).astype(jnp.float32)
        rhs = jnp.concatenate([xt, xt * xt, tail], axis=-1)    # [E_t, Dr]
        acc_ref[...] += jnp.dot(mask, rhs, preferred_element_type=jnp.float32)

        # segment min / max: masked reduce over `chunk`-edge groups,
        # accumulated directly into VMEM scratch (bounds live vregs / spills).
        node_ids = (lax.broadcasted_iota(jnp.int32, (n_tile, 1, 1), 0)
                    + node_off)
        neg = jnp.float32(-jnp.inf)
        pos = jnp.float32(jnp.inf)

        def do_chunk(s):
            xc = x_ref[pl.ds(s, chunk), :].astype(jnp.float32)  # [C, D]
            ic = idxc_ref[pl.ds(s, chunk), :]                   # [C, 1]
            sel = ic[None, :, :] == node_ids                    # [N_t, C, 1]
            xb = xc[None, :, :]
            mx_ref[...] = jnp.maximum(
                mx_ref[...], jnp.max(jnp.where(sel, xb, neg), axis=1))
            mn_ref[...] = jnp.minimum(
                mn_ref[...], jnp.min(jnp.where(sel, xb, pos), axis=1))

        n_chunks = e_tile // chunk
        if n_chunks <= 8:                       # small tile: fully unrolled
            for c in range(n_chunks):
                do_chunk(c * chunk)
        else:                                   # large tile: loop, unrolled xU
            u_f = 4 if n_chunks % 4 == 0 else (2 if n_chunks % 2 == 0 else 1)

            @pl.loop(0, n_chunks // u_f)
            def _(c):
                base = pl.multiple_of(c * (u_f * chunk), chunk)
                for u in range(u_f):
                    do_chunk(base + u * chunk)

    # ---- finalize: stats, scalers, fused PHM transform, lane-dense store -----
    @pl.when(ei == pl.num_programs(1) - 1)
    def _():
        acc = acc_ref[...]
        sums = acc[:, 0:d]
        sqs = acc[:, d:2 * d]
        counts = acc[:, 2 * d:2 * d + 1]                       # [N_t, 1]
        has = counts > 0.0
        denom = jnp.maximum(counts, 1.0)
        mean = sums / denom
        var = sqs / denom - mean * mean
        std = jnp.sqrt(jnp.maximum(var, 0.0) + 1e-5)
        mxv = jnp.where(has, mx_ref[...], 0.0)                 # empty seg -> 0
        mnv = jnp.where(has, mn_ref[...], 0.0)

        # h_ref rows ordered (aggregator, component, feature); columns are
        # [identity | amplification | attenuation] blocks, each `outp` wide.
        stats = jnp.concatenate([mean, mnv, mxv, std], axis=-1)   # [N_t, 4D]
        part = jnp.dot(stats, h_ref[...], preferred_element_type=jnp.float32)

        log_deg = jnp.log(counts + 1.0)
        amp = log_deg * (1.0 / avg_log)
        att = jnp.where(has, avg_log / jnp.where(has, log_deg, 1.0), 1.0)
        y = (part[:, 0 * outp:1 * outp]
             + amp * part[:, 1 * outp:2 * outp]
             + att * part[:, 2 * outp:3 * outp]
             + b_ref[...])
        out_ref[...] = y.astype(out_ref.dtype)


def pna_aggregator(x, idx, dim_size, phm_rule, w, bias, avg_log):
    """x: [E, P*F] f32, idx: [E] int32 -> [dim_size, P*out_features] f32."""
    E, D = x.shape
    P = phm_rule.shape[0]
    F = D // P
    dout = w.shape[2]
    A_n, S_n = len(AGGREGATORS), len(SCALERS)
    OUT = P * dout
    OUTp = _round_up(OUT, 128)                    # lane-dense output

    # ---- parameter glue (plain JAX, once per call) ---------------------------
    # H = sum_i kron(phm_rule[i], W[i]) : rows indexed (p, s, a, f)
    H = jnp.einsum("ipq,ido->pdqo", phm_rule, w).reshape(P * A_n * S_n * F, OUT)
    H5 = H.reshape(P, S_n, A_n, F, OUT)
    Hk = jnp.transpose(H5, (2, 0, 3, 1, 4))       # [A, P, F, S, OUT]
    Hk = jnp.pad(Hk, ((0, 0), (0, 0), (0, 0), (0, 0), (0, OUTp - OUT)))
    H2 = Hk.reshape(A_n * P * F, S_n * OUTp).astype(jnp.float32)   # fused weight
    b_pad = jnp.pad(bias.reshape(1, OUT).astype(jnp.float32),
                    ((0, 0), (0, OUTp - OUT)))

    # ---- tiling / padding ----------------------------------------------------
    C = 32                                         # min/max edge chunk
    Dr = _round_up(2 * D + 1, 128)                 # [x | x^2 | count] lanes
    # keep the x edge block <= ~4 MiB (double-buffered by the pipeline) and a
    # 128-multiple wide when more than one edge block exists (BlockSpec rule).
    e_cap = _round_up(max(128, min(2048, (4 * 1024 * 1024) // max(4 * D, 1))), 128)
    E_tile = _round_up(E, C) if _round_up(E, C) <= e_cap else e_cap
    E_pad = _round_up(E, E_tile)
    E_blocks = E_pad // E_tile

    N = int(dim_size)
    if N <= 8:
        N_tile = 8
    else:
        N_tile = min(128, _round_up((N + 1) // 2, 8))   # >=2 tiles (v7x megacore)
    # bound accumulator scratch for very wide features
    max_nt = max(8, (8 * 1024 * 1024) // max(4 * (Dr + 2 * D), 1))
    N_tile = min(N_tile, max(8, (max_nt // 8) * 8))
    N_pad = _round_up(N, N_tile)
    N_blocks = N_pad // N_tile

    # ---- sort edges by destination so each node tile touches a contiguous ----
    # ---- range of edge blocks (ranges scalar-prefetched into SMEM) -----------
    idx_i32 = idx.astype(jnp.int32)
    order = jnp.argsort(idx_i32)
    x_s = x[order]
    idx_s = idx_i32[order]
    x_p = jnp.zeros((E_pad, D), x.dtype).at[:E].set(x_s)
    idx_p = jnp.full((E_pad,), N_pad, jnp.int32).at[:E].set(idx_s)  # pad never matches
    idx_row = idx_p.reshape(1, E_pad)              # lane layout (scatter mask)
    idx_col = idx_p.reshape(E_pad, 1)              # sublane layout (min/max)

    tile_starts = jnp.arange(N_blocks, dtype=jnp.int32) * N_tile
    e_lo = jnp.searchsorted(idx_s, tile_starts, side="left").astype(jnp.int32)
    e_hi = jnp.searchsorted(idx_s, tile_starts + N_tile,
                            side="left").astype(jnp.int32)
    blk_lo = jnp.minimum(e_lo // E_tile, E_blocks - 1).astype(jnp.int32)
    blk_hi = jnp.where(e_hi > e_lo, (e_hi + E_tile - 1) // E_tile, blk_lo)
    nblk = jnp.maximum(blk_hi - blk_lo, 0).astype(jnp.int32)

    def edge_block(ni, ei, lo_ref, nb_ref):
        # clamp past-the-end steps to the last owned block -> no extra DMA
        return lo_ref[ni] + jnp.minimum(ei, jnp.maximum(nb_ref[ni] - 1, 0))

    kernel = functools.partial(_pna_kernel, n_tile=N_tile, e_tile=E_tile,
                               chunk=C, d=D, dr=Dr, outp=OUTp,
                               avg_log=float(avg_log))

    vmem_cap = _vmem_capacity_bytes()
    vmem_limit = int(max(32 * 1024 * 1024,
                         min(vmem_cap * 3 // 5, 100 * 1024 * 1024)))

    out = pl.pallas_call(
        kernel,
        out_shape=jax.ShapeDtypeStruct((N_pad, OUTp), jnp.float32),
        grid_spec=pltpu.PrefetchScalarGridSpec(
            num_scalar_prefetch=2,
            grid=(N_blocks, E_blocks),
            in_specs=[
                pl.BlockSpec((E_tile, D),
                             lambda ni, ei, lo, nb: (edge_block(ni, ei, lo, nb), 0)),
                pl.BlockSpec((1, E_tile),
                             lambda ni, ei, lo, nb: (0, edge_block(ni, ei, lo, nb))),
                pl.BlockSpec((E_tile, 1),
                             lambda ni, ei, lo, nb: (edge_block(ni, ei, lo, nb), 0)),
                pl.BlockSpec((A_n * P * F, S_n * OUTp),
                             lambda ni, ei, lo, nb: (0, 0)),                 # H2
                pl.BlockSpec((1, OUTp), lambda ni, ei, lo, nb: (0, 0)),      # bias
            ],
            out_specs=pl.BlockSpec((N_tile, OUTp),
                                   lambda ni, ei, lo, nb: (ni, 0)),
            scratch_shapes=[
                pltpu.VMEM((N_tile, Dr), jnp.float32),   # [sum | sumsq | count]
                pltpu.VMEM((N_tile, D), jnp.float32),    # running max
                pltpu.VMEM((N_tile, D), jnp.float32),    # running min
            ]),
        compiler_params=pltpu.CompilerParams(
            dimension_semantics=("parallel", "arbitrary"),
            vmem_limit_bytes=vmem_limit),
    )(blk_lo, nblk, x_p, idx_row, idx_col, H2, b_pad)

    return out[:N, :OUT]


def reference(x, idx, N, phm_rule, w, bias, avg_log):
    """Pure-JAX reference matching the PyTorch forward semantics."""
    P = phm_rule.shape[0]
    E, D = x.shape
    F = D // P
    counts = jax.ops.segment_sum(jnp.ones((E,), jnp.float32), idx,
                                 num_segments=N).reshape(N, 1)
    sums = jax.ops.segment_sum(x, idx, num_segments=N)
    sumsq = jax.ops.segment_sum(x * x, idx, num_segments=N)
    seg_max = jax.ops.segment_max(x, idx, num_segments=N)
    seg_min = jax.ops.segment_min(x, idx, num_segments=N)
    has = counts > 0
    mx = jnp.where(has, seg_max, 0.0)
    mn = jnp.where(has, seg_min, 0.0)
    cnt = jnp.maximum(counts, 1.0)
    mean = sums / cnt
    var = sumsq / cnt - mean * mean
    std = jnp.sqrt(jnp.maximum(var, 0.0) + 1e-5)
    aggs = {"mean": mean, "min": mn, "max": mx, "std": std}
    z = jnp.concatenate([aggs[a][:, p * F:(p + 1) * F]
                         for p in range(P) for a in AGGREGATORS], -1)
    deg = counts
    log_deg = jnp.log(deg + 1.0)
    amp = z * (log_deg / avg_log)
    att = z * jnp.where(deg == 0, 1.0,
                        avg_log / jnp.where(deg == 0, 1.0, log_deg))
    scaled = {"identity": z, "amplification": amp, "attenuation": att}
    A = len(AGGREGATORS)
    cw = A * F
    feat = jnp.concatenate([scaled[s][:, p * cw:(p + 1) * cw]
                            for p in range(P) for s in SCALERS], -1)
    din, dout = w.shape[1], w.shape[2]
    H = jnp.einsum("ipq,ido->pdqo", phm_rule, w).reshape(P * din, P * dout)
    return feat @ H + bias.reshape(1, -1)


if __name__ == "__main__":
    key = jax.random.PRNGKey(0)
    P, F, OUT_F = 4, 8, 8           # phm_dim, in_features, out_features
    E, N = 16, 8                    # num edges/messages, num nodes (dim_size)
    A_n, S_n = len(AGGREGATORS), len(SCALERS)
    OUT_TRAFO = F * A_n * S_n       # PHMLinear per-component input dim

    k1, k2, k3, k4, k5, k6 = jax.random.split(key, 6)
    x = jax.random.normal(k1, (E, P * F), jnp.float32)
    idx = jax.random.randint(k2, (E,), 0, N, jnp.int32)
    phm_rule = jax.random.normal(k3, (P, P, P), jnp.float32) * 0.5
    w = jax.random.normal(k4, (P, OUT_TRAFO, OUT_F), jnp.float32) / jnp.sqrt(
        jnp.float32(OUT_TRAFO))
    bias = jax.random.normal(k5, (P * OUT_F,), jnp.float32) * 0.01
    deg_hist = jax.random.randint(k6, (32,), 1, 6).astype(jnp.float32)
    avg_log = float(jnp.mean(jnp.log(deg_hist + 1.0)))

    out = jax.block_until_ready(
        pna_aggregator(x, idx, N, phm_rule, w, bias, avg_log))
    ref = reference(x, idx, N, phm_rule, w, bias, avg_log)
    assert out.shape == (N, P * OUT_F)
    err = float(jnp.max(jnp.abs(out - ref)))
    assert jnp.allclose(out, ref, atol=2e-4, rtol=2e-4), f"max abs err {err}"

    # ragged config to exercise edge / node padding paths
    E2, N2 = 13, 7
    x2 = jax.random.normal(k1, (E2, P * F), jnp.float32)
    idx2 = jax.random.randint(k2, (E2,), 0, N2, jnp.int32)
    out2 = jax.block_until_ready(
        pna_aggregator(x2, idx2, N2, phm_rule, w, bias, avg_log))
    ref2 = reference(x2, idx2, N2, phm_rule, w, bias, avg_log)
    err2 = float(jnp.max(jnp.abs(out2 - ref2)))
    assert jnp.allclose(out2, ref2, atol=2e-4, rtol=2e-4), f"max abs err {err2}"

    # larger config: multiple node tiles + multiple edge blocks, exercising the
    # sorted / scalar-prefetch block-range path and the chunked min/max loop.
    E3, N3 = 2500, 50
    x3 = jax.random.normal(k1, (E3, P * F), jnp.float32)
    idx3 = jax.random.randint(k2, (E3,), 0, N3, jnp.int32)
    out3 = jax.block_until_ready(
        pna_aggregator(x3, idx3, N3, phm_rule, w, bias, avg_log))
    ref3 = reference(x3, idx3, N3, phm_rule, w, bias, avg_log)
    err3 = float(jnp.max(jnp.abs(out3 - ref3)))
    assert jnp.allclose(out3, ref3, atol=1e-3, rtol=1e-3), f"max abs err {err3}"

    print("KERNEL_OK")
</pallas_src>

<mosaic_0001>
module attributes {stable_mosaic.version = 11 : i64} {
  func.func @_pna_kernel(%arg0: i32, %arg1: i32, %arg2: memref<1xi32, #tpu.memory_space<smem>>, %arg3: memref<1xi32, #tpu.memory_space<smem>>, %arg4: memref<32x32xf32, #tpu.memory_space<vmem>>, %arg5: memref<1x32xi32, #tpu.memory_space<vmem>>, %arg6: memref<32x1xi32, #tpu.memory_space<vmem>>, %arg7: memref<128x384xf32, #tpu.memory_space<vmem>>, %arg8: memref<1x128xf32, #tpu.memory_space<vmem>>, %arg9: memref<8x128xf32, #tpu.memory_space<vmem>>, %arg10: memref<8x128xf32, #tpu.memory_space<vmem>>, %arg11: memref<8x32xf32, #tpu.memory_space<vmem>>, %arg12: memref<8x32xf32, #tpu.memory_space<vmem>>) attributes {dimension_semantics = [#tpu.dimension_semantics<parallel>, #tpu.dimension_semantics<arbitrary>], iteration_bounds = array<i64: 1, 1>, scalar_prefetch = 2 : i64, scratch_operands = 3 : i64, tpu.core_type = #tpu.core_type<tc>, window_params = [{transform_indices = @transform_0, window_bounds = array<i64: 32, 32>}, {transform_indices = @transform_1, window_bounds = array<i64: 1, 32>}, {transform_indices = @transform_2, window_bounds = array<i64: 32, 1>}, {pipeline_mode = #tpu.pipeline_mode<synchronous>, transform_indices = @transform_3, window_bounds = array<i64: 128, 384>}, {pipeline_mode = #tpu.pipeline_mode<synchronous>, transform_indices = @transform_4, window_bounds = array<i64: 1, 128>}, {transform_indices = @transform_5, window_bounds = array<i64: 8, 128>}]} {
    %c8_i32 = arith.constant 8 : i32
    %0 = arith.muli %arg0, %c8_i32 : i32
    %c0_i32 = arith.constant 0 : i32
    %1 = arith.cmpi eq, %arg1, %c0_i32 : i32
    %2 = arith.extui %1 : i1 to i32
    %c0_i32_0 = arith.constant 0 : i32
    %3 = arith.cmpi ne, %2, %c0_i32_0 : i32
    scf.if %3 {
      %cst = arith.constant 0.000000e+00 : f32
      %12 = vector.broadcast %cst : f32 to vector<8x128xf32>
      %c0 = arith.constant 0 : index
      %c0_4 = arith.constant 0 : index
      %13 = vector.load %arg10[%c0, %c0_4] : memref<8x128xf32, #tpu.memory_space<vmem>>, vector<8x128xf32>
      tpu.vector_store %arg10[%c0, %c0_4], %12 {strides = array<i32>} : memref<8x128xf32, #tpu.memory_space<vmem>>, vector<8x128xf32>,
      %cst_5 = arith.constant 0xFF800000 : f32
      %14 = vector.broadcast %cst_5 : f32 to vector<8x32xf32>
      %c0_6 = arith.constant 0 : index
      %c0_7 = arith.constant 0 : index
      %15 = vector.load %arg11[%c0_6, %c0_7] : memref<8x32xf32, #tpu.memory_space<vmem>>, vector<8x32xf32>
      tpu.vector_store %arg11[%c0_6, %c0_7], %14 {strides = array<i32>} : memref<8x32xf32, #tpu.memory_space<vmem>>, vector<8x32xf32>,
      %cst_8 = arith.constant 0x7F800000 : f32
      %16 = vector.broadcast %cst_8 : f32 to vector<8x32xf32>
      %c0_9 = arith.constant 0 : index
      %c0_10 = arith.constant 0 : index
      %17 = vector.load %arg12[%c0_9, %c0_10] : memref<8x32xf32, #tpu.memory_space<vmem>>, vector<8x32xf32>
      tpu.vector_store %arg12[%c0_9, %c0_10], %16 {strides = array<i32>} : memref<8x32xf32, #tpu.memory_space<vmem>>, vector<8x32xf32>,
    } else {
    }
    %4 = arith.index_cast %arg0 : i32 to index
    %5 = memref.load %arg3[%4] : memref<1xi32, #tpu.memory_space<smem>>
    %6 = arith.cmpi slt, %arg1, %5 : i32
    %7 = arith.extui %6 : i1 to i32
    %c0_i32_1 = arith.constant 0 : i32
    %8 = arith.cmpi ne, %7, %c0_i32_1 : i32
    scf.if %8 {
      %c0 = arith.constant 0 : index
      %c0_4 = arith.constant 0 : index
      %12 = vector.load %arg4[%c0, %c0_4] : memref<32x32xf32, #tpu.memory_space<vmem>>, vector<32x32xf32>
      %13 = tpu.iota {dimensions = array<i32: 0>} : vector<8x32xi32>
      %14 = vector.broadcast %0 : i32 to vector<8x32xi32>
      %15 = arith.addi %13, %14 : vector<8x32xi32>
      %c0_5 = arith.constant 0 : index
      %c0_6 = arith.constant 0 : index
      %16 = vector.load %arg5[%c0_5, %c0_6] : memref<1x32xi32, #tpu.memory_space<vmem>>, vector<1x32xi32>
      %17 = vector.broadcast %16 : vector<1x32xi32> to vector<8x32xi32>
      %18 = arith.cmpi eq, %15, %17 : vector<8x32xi32>
      %19 = arith.extui %18 : vector<8x32xi1> to vector<8x32xi32>
      %20 = arith.sitofp %19 : vector<8x32xi32> to vector<8x32xf32>
      %21 = tpu.iota {dimensions = array<i32: 1>} : vector<32x64xi32>
      %c0_i32_7 = arith.constant 0 : i32
      %22 = vector.broadcast %c0_i32_7 : i32 to vector<32x64xi32>
      %23 = arith.cmpi eq, %21, %22 : vector<32x64xi32>
      %24 = arith.extui %23 : vector<32x64xi1> to vector<32x64xi32>
      %25 = arith.sitofp %24 : vector<32x64xi32> to vector<32x64xf32>
      %26 = arith.mulf %12, %12 : vector<32x32xf32>
      %27 = tpu.concatenate %12, %26, %25 in 1 : vector<32x32xf32>, vector<32x32xf32>, vector<32x64xf32> -> vector<32x128xf32>
      %c0_8 = arith.constant 0 : index
      %c0_9 = arith.constant 0 : index
      %28 = vector.load %arg10[%c0_8, %c0_9] : memref<8x128xf32, #tpu.memory_space<vmem>>, vector<8x128xf32>
      %cst = arith.constant dense<0.000000e+00> : vector<8x128xf32>
      %29 = tpu.matmul %20, %27, %cst {dimension_numbers = #tpu.dot_dimension_numbers<[1], [0], [0], [1], [0, 0, 1, 1], [], []>} : vector<8x32xf32>, vector<32x128xf32>, vector<8x128xf32> -> vector<8x128xf32>
      %30 = arith.addf %28, %29 : vector<8x128xf32>
      %c0_10 = arith.constant 0 : index
      %c0_11 = arith.constant 0 : index
      %31 = vector.load %arg10[%c0_10, %c0_11] : memref<8x128xf32, #tpu.memory_space<vmem>>, vector<8x128xf32>
      tpu.vector_store %arg10[%c0_10, %c0_11], %30 {strides = array<i32>} : memref<8x128xf32, #tpu.memory_space<vmem>>, vector<8x128xf32>,
      %32 = tpu.iota {dimensions = array<i32: 0>} : vector<8x1x1xi32>
      %33 = vector.broadcast %0 : i32 to vector<8x1x1xi32>
      %34 = arith.addi %32, %33 : vector<8x1x1xi32>
      %c0_12 = arith.constant 0 : index
      %c0_13 = arith.constant 0 : index
      %35 = vector.load %arg4[%c0_12, %c0_13] : memref<32x32xf32, #tpu.memory_space<vmem>>, vector<32x32xf32>
      %c0_14 = arith.constant 0 : index
      %c0_15 = arith.constant 0 : index
      %36 = vector.load %arg6[%c0_14, %c0_15] : memref<32x1xi32, #tpu.memory_space<vmem>>, vector<32x1xi32>
      %37 = vector.shape_cast %36 : vector<32x1xi32> to vector<1x32x1xi32>
      %38 = vector.broadcast %37 : vector<1x32x1xi32> to vector<8x32x1xi32>
      %39 = vector.broadcast %34 : vector<8x1x1xi32> to vector<8x32x1xi32>
      %40 = arith.cmpi eq, %38, %39 : vector<8x32x1xi32>
      %41 = vector.shape_cast %35 : vector<32x32xf32> to vector<1x32x32xf32>
      %c0_16 = arith.constant 0 : index
      %c0_17 = arith.constant 0 : index
      %42 = vector.load %arg11[%c0_16, %c0_17] : memref<8x32xf32, #tpu.memory_space<vmem>>, vector<8x32xf32>
      %cst_18 = arith.constant 0xFF800000 : f32
      %43 = vector.shape_cast %40 : vector<8x32x1xi1> to vector<8x32x1xi1>
      %44 = vector.broadcast %43 : vector<8x32x1xi1> to vector<8x32x32xi1>
      %45 = vector.shape_cast %41 : vector<1x32x32xf32> to vector<1x32x32xf32>
      %46 = vector.broadcast %45 : vector<1x32x32xf32> to vector<8x32x32xf32>
      %47 = vector.broadcast %cst_18 : f32 to vector<8x32x32xf32>
      %48 = arith.select %44, %46, %47 : vector<8x32x32xi1>, vector<8x32x32xf32>
      %cst_19 = arith.constant dense<0xFF800000> : vector<8x32xf32>
      %49 = vector.multi_reduction <maximumf>, %48, %cst_19 [1] : vector<8x32x32xf32> to vector<8x32xf32>
      %50 = arith.maximumf %42, %49 : vector<8x32xf32>
      %c0_20 = arith.constant 0 : index
      %c0_21 = arith.constant 0 : index
      %51 = vector.load %arg11[%c0_20, %c0_21] : memref<8x32xf32, #tpu.memory_space<vmem>>, vector<8x32xf32>
      tpu.vector_store %arg11[%c0_20, %c0_21], %50 {strides = array<i32>} : memref<8x32xf32, #tpu.memory_space<vmem>>, vector<8x32xf32>,
      %c0_22 = arith.constant 0 : index
      %c0_23 = arith.constant 0 : index
      %52 = vector.load %arg12[%c0_22, %c0_23] : memref<8x32xf32, #tpu.memory_space<vmem>>, vector<8x32xf32>
      %cst_24 = arith.constant 0x7F800000 : f32
      %53 = vector.shape_cast %40 : vector<8x32x1xi1> to vector<8x32x1xi1>
      %54 = vector.broadcast %53 : vector<8x32x1xi1> to vector<8x32x32xi1>
      %55 = vector.shape_cast %41 : vector<1x32x32xf32> to vector<1x32x32xf32>
      %56 = vector.broadcast %55 : vector<1x32x32xf32> to vector<8x32x32xf32>
      %57 = vector.broadcast %cst_24 : f32 to vector<8x32x32xf32>
      %58 = arith.select %54, %56, %57 : vector<8x32x32xi1>, vector<8x32x32xf32>
      %cst_25 = arith.constant dense<0x7F800000> : vector<8x32xf32>
      %59 = vector.multi_reduction <minimumf>, %58, %cst_25 [1] : vector<8x32x32xf32> to vector<8x32xf32>
      %60 = arith.minimumf %52, %59 : vector<8x32xf32>
      %c0_26 = arith.constant 0 : index
      %c0_27 = arith.constant 0 : index
      %61 = vector.load %arg12[%c0_26, %c0_27] : memref<8x32xf32, #tpu.memory_space<vmem>>, vector<8x32xf32>
      tpu.vector_store %arg12[%c0_26, %c0_27], %60 {strides = array<i32>} : memref<8x32xf32, #tpu.memory_space<vmem>>, vector<8x32xf32>,
    } else {
    }
    %c0_i32_2 = arith.constant 0 : i32
    %9 = arith.cmpi eq, %arg1, %c0_i32_2 : i32
    %10 = arith.extui %9 : i1 to i32
    %c0_i32_3 = arith.constant 0 : i32
    %11 = arith.cmpi ne, %10, %c0_i32_3 : i32
    scf.if %11 {
      %c0 = arith.constant 0 : index
      %c0_4 = arith.constant 0 : index
      %12 = vector.load %arg10[%c0, %c0_4] : memref<8x128xf32, #tpu.memory_space<vmem>>, vector<8x128xf32>
      %13 = vector.extract_strided_slice %12 {offsets = [0, 0], sizes = [8, 32], strides = [1, 1]} : vector<8x128xf32> to vector<8x32xf32>
      %14 = vector.extract_strided_slice %12 {offsets = [0, 32], sizes = [8, 32], strides = [1, 1]} : vector<8x128xf32> to vector<8x32xf32>
      %15 = vector.extract_strided_slice %12 {offsets = [0, 64], sizes = [8, 1], strides = [1, 1]} : vector<8x128xf32> to vector<8x1xf32>
      %cst = arith.constant 0.000000e+00 : f32
      %16 = vector.broadcast %cst : f32 to vector<8x1xf32>
      %17 = arith.cmpf ogt, %15, %16 : vector<8x1xf32>
      %cst_5 = arith.constant 1.000000e+00 : f32
      %18 = vector.broadcast %cst_5 : f32 to vector<8x1xf32>
      %19 = arith.maximumf %15, %18 : vector<8x1xf32>
      %20 = vector.broadcast %19 : vector<8x1xf32> to vector<8x32xf32>
      %21 = arith.divf %13, %20 : vector<8x32xf32>
      %22 = vector.broadcast %19 : vector<8x1xf32> to vector<8x32xf32>
      %23 = arith.divf %14, %22 : vector<8x32xf32>
      %24 = arith.mulf %21, %21 : vector<8x32xf32>
      %25 = arith.subf %23, %24 : vector<8x32xf32>
      %cst_6 = arith.constant 0.000000e+00 : f32
      %26 = vector.broadcast %cst_6 : f32 to vector<8x32xf32>
      %27 = arith.maximumf %25, %26 : vector<8x32xf32>
      %cst_7 = arith.constant 9.99999974E-6 : f32
      %28 = vector.broadcast %cst_7 : f32 to vector<8x32xf32>
      %29 = arith.addf %27, %28 : vector<8x32xf32>
      %30 = math.sqrt %29 : vector<8x32xf32>
      %c0_8 = arith.constant 0 : index
      %c0_9 = arith.constant 0 : index
      %31 = vector.load %arg11[%c0_8, %c0_9] : memref<8x32xf32, #tpu.memory_space<vmem>>, vector<8x32xf32>
      %cst_10 = arith.constant 0.000000e+00 : f32
      %32 = vector.shape_cast %17 : vector<8x1xi1> to vector<8x1xi1>
      %33 = vector.broadcast %32 : vector<8x1xi1> to vector<8x32xi1>
      %34 = vector.broadcast %cst_10 : f32 to vector<8x32xf32>
      %35 = arith.select %33, %31, %34 : vector<8x32xi1>, vector<8x32xf32>
      %c0_11 = arith.constant 0 : index
      %c0_12 = arith.constant 0 : index
      %36 = vector.load %arg12[%c0_11, %c0_12] : memref<8x32xf32, #tpu.memory_space<vmem>>, vector<8x32xf32>
      %cst_13 = arith.constant 0.000000e+00 : f32
      %37 = vector.shape_cast %17 : vector<8x1xi1> to vector<8x1xi1>
      %38 = vector.broadcast %37 : vector<8x1xi1> to vector<8x32xi1>
      %39 = vector.broadcast %cst_13 : f32 to vector<8x32xf32>
      %40 = arith.select %38, %36, %39 : vector<8x32xi1>, vector<8x32xf32>
      %41 = tpu.concatenate %21, %40, %35, %30 in 1 : vector<8x32xf32>, vector<8x32xf32>, vector<8x32xf32>, vector<8x32xf32> -> vector<8x128xf32>
      %c0_14 = arith.constant 0 : index
      %c0_15 = arith.constant 0 : index
      %42 = vector.load %arg7[%c0_14, %c0_15] : memref<128x384xf32, #tpu.memory_space<vmem>>, vector<128x384xf32>
      %cst_16 = arith.constant dense<0.000000e+00> : vector<8x384xf32>
      %43 = tpu.matmul %41, %42, %cst_16 {dimension_numbers = #tpu.dot_dimension_numbers<[1], [0], [0], [1], [0, 0, 1, 1], [], []>} : vector<8x128xf32>, vector<128x384xf32>, vector<8x384xf32> -> vector<8x384xf32>
      %cst_17 = arith.constant 1.000000e+00 : f32
      %44 = vector.broadcast %cst_17 : f32 to vector<8x1xf32>
      %45 = arith.addf %15, %44 : vector<8x1xf32>
      %46 = math.log %45 : vector<8x1xf32>
      %cst_18 = arith.constant 0.806902408 : f32
      %47 = vector.broadcast %cst_18 : f32 to vector<8x1xf32>
      %48 = arith.mulf %46, %47 : vector<8x1xf32>
      %cst_19 = arith.constant 1.000000e+00 : f32
      %49 = vector.broadcast %cst_19 : f32 to vector<8x1xf32>
      %50 = arith.select %17, %46, %49 : vector<8x1xi1>, vector<8x1xf32>
      %cst_20 = arith.constant 1.23930728 : f32
      %51 = vector.broadcast %cst_20 : f32 to vector<8x1xf32>
      %52 = arith.divf %51, %50 : vector<8x1xf32>
      %cst_21 = arith.constant 1.000000e+00 : f32
      %53 = vector.broadcast %cst_21 : f32 to vector<8x1xf32>
      %54 = arith.select %17, %52, %53 : vector<8x1xi1>, vector<8x1xf32>
      %55 = vector.extract_strided_slice %43 {offsets = [0, 0], sizes = [8, 128], strides = [1, 1]} : vector<8x384xf32> to vector<8x128xf32>
      %56 = vector.extract_strided_slice %43 {offsets = [0, 128], sizes = [8, 128], strides = [1, 1]} : vector<8x384xf32> to vector<8x128xf32>
      %57 = vector.broadcast %48 : vector<8x1xf32> to vector<8x128xf32>
      %58 = arith.mulf %57, %56 : vector<8x128xf32>
      %59 = arith.addf %55, %58 : vector<8x128xf32>
      %60 = vector.extract_strided_slice %43 {offsets = [0, 256], sizes = [8, 128], strides = [1, 1]} : vector<8x384xf32> to vector<8x128xf32>
      %61 = vector.broadcast %54 : vector<8x1xf32> to vector<8x128xf32>
      %62 = arith.mulf %61, %60 : vector<8x128xf32>
      %63 = arith.addf %59, %62 : vector<8x128xf32>
      %c0_22 = arith.constant 0 : index
      %c0_23 = arith.constant 0 : index
      %64 = vector.load %arg8[%c0_22, %c0_23] : memref<1x128xf32, #tpu.memory_space<vmem>>, vector<1x128xf32>
      %65 = vector.broadcast %64 : vector<1x128xf32> to vector<8x128xf32>
      %66 = arith.addf %63, %65 : vector<8x128xf32>
      %c0_24 = arith.constant 0 : index
      %c0_25 = arith.constant 0 : index
      %67 = vector.load %arg9[%c0_24, %c0_25] : memref<8x128xf32, #tpu.memory_space<vmem>>, vector<8x128xf32>
      tpu.vector_store %arg9[%c0_24, %c0_25], %66 {strides = array<i32>} : memref<8x128xf32, #tpu.memory_space<vmem>>, vector<8x128xf32>,
    } else {
    }
    return
  }
  func.func @transform_0(%arg0: i32, %arg1: i32, %arg2: memref<1xi32, #tpu.memory_space<smem>>, %arg3: memref<1xi32, #tpu.memory_space<smem>>) -> (i32, i32) {
    %0 = arith.index_cast %arg0 : i32 to index
    %1 = memref.load %arg2[%0] : memref<1xi32, #tpu.memory_space<smem>>
    %2 = arith.index_cast %arg0 : i32 to index
    %3 = memref.load %arg3[%2] : memref<1xi32, #tpu.memory_space<smem>>
    %c1_i32 = arith.constant 1 : i32
    %4 = arith.subi %3, %c1_i32 : i32
    %c0_i32 = arith.constant 0 : i32
    %5 = arith.maxsi %4, %c0_i32 : i32
    %6 = arith.minsi %arg1, %5 : i32
    %7 = arith.addi %1, %6 : i32
    %c0_i32_0 = arith.constant 0 : i32
    %c0_i32_1 = arith.constant 0 : i32
    return %7, %c0_i32_0 : i32, i32
  }
  func.func @transform_1(%arg0: i32, %arg1: i32, %arg2: memref<1xi32, #tpu.memory_space<smem>>, %arg3: memref<1xi32, #tpu.memory_space<smem>>) -> (i32, i32) {
    %0 = arith.index_cast %arg0 : i32 to index
    %1 = memref.load %arg2[%0] : memref<1xi32, #tpu.memory_space<smem>>
    %2 = arith.index_cast %arg0 : i32 to index
    %3 = memref.load %arg3[%2] : memref<1xi32, #tpu.memory_space<smem>>
    %c1_i32 = arith.constant 1 : i32
    %4 = arith.subi %3, %c1_i32 : i32
    %c0_i32 = arith.constant 0 : i32
    %5 = arith.maxsi %4, %c0_i32 : i32
    %6 = arith.minsi %arg1, %5 : i32
    %7 = arith.addi %1, %6 : i32
    %c0_i32_0 = arith.constant 0 : i32
    %c0_i32_1 = arith.constant 0 : i32
    return %c0_i32_0, %7 : i32, i32
  }
  func.func @transform_2(%arg0: i32, %arg1: i32, %arg2: memref<1xi32, #tpu.memory_space<smem>>, %arg3: memref<1xi32, #tpu.memory_space<smem>>) -> (i32, i32) {
    %0 = arith.index_cast %arg0 : i32 to index
    %1 = memref.load %arg2[%0] : memref<1xi32, #tpu.memory_space<smem>>
    %2 = arith.index_cast %arg0 : i32 to index
    %3 = memref.load %arg3[%2] : memref<1xi32, #tpu.memory_space<smem>>
    %c1_i32 = arith.constant 1 : i32
    %4 = arith.subi %3, %c1_i32 : i32
    %c0_i32 = arith.constant 0 : i32
    %5 = arith.maxsi %4, %c0_i32 : i32
    %6 = arith.minsi %arg1, %5 : i32
    %7 = arith.addi %1, %6 : i32
    %c0_i32_0 = arith.constant 0 : i32
    %c0_i32_1 = arith.constant 0 : i32
    return %7, %c0_i32_0 : i32, i32
  }
  func.func @transform_3(%arg0: i32, %arg1: i32, %arg2: memref<1xi32, #tpu.memory_space<smem>>, %arg3: memref<1xi32, #tpu.memory_space<smem>>) -> (i32, i32) {
    %c0_i32 = arith.constant 0 : i32
    %c0_i32_0 = arith.constant 0 : i32
    %c0_i32_1 = arith.constant 0 : i32
    return %c0_i32, %c0_i32_0 : i32, i32
  }
  func.func @transform_4(%arg0: i32, %arg1: i32, %arg2: memref<1xi32, #tpu.memory_space<smem>>, %arg3: memref<1xi32, #tpu.memory_space<smem>>) -> (i32, i32) {
    %c0_i32 = arith.constant 0 : i32
    %c0_i32_0 = arith.constant 0 : i32
    %c0_i32_1 = arith.constant 0 : i32
    return %c0_i32, %c0_i32_0 : i32, i32
  }
  func.func @transform_5(%arg0: i32, %arg1: i32, %arg2: memref<1xi32, #tpu.memory_space<smem>>, %arg3: memref<1xi32, #tpu.memory_space<smem>>) -> (i32, i32) {
    %c0_i32 = arith.constant 0 : i32
    %c0_i32_0 = arith.constant 0 : i32
    return %arg0, %c0_i32 : i32, i32
  }
}

</mosaic_0001>

<llo_original>
// kernel: tpu_custom_call.1
$region0: #{tpu_custom_call.1}
  #allocation0 [shape = 'u32[]', space=smem, size = 0x4, offset = 0x4, fixed_abs, tag = 'smem constant byte address 0x4 - core index']
  #allocation1 [shape = 'u32[144,128]{1,0:T(1,128)}', space=vmem, size = 0x12000, scoped, tag = 'internal scratch']
  #allocation2 [shape = 'f32[8,128]{1,0:T(8,128)}', space=vmem, size = 0x1000, scoped, tag = 'scratch operand']
  #allocation3 [shape = 'f32[8,32]{1,0:T(8,128)}', space=vmem, size = 0x1000, scoped, tag = 'scratch operand']
  #allocation4 [shape = 'f32[8,32]{1,0:T(8,128)}', space=vmem, size = 0x1000, scoped, tag = 'scratch operand']
  #allocation5 [shape = 's32[1]{0}', space=sflag, size = 0x4, scoped, tag = 'scoped memory for tpu_custom_call.1']
  #allocation6 [shape = 's32[1]{0:T(128)S(6)}', space=smem, size = 0x200, scoped, tag = 'prefetched SMEM operand 0']
  #allocation7 [shape = 's32[1]{0:T(128)S(6)}', space=smem, size = 0x200, scoped, tag = 'prefetched SMEM operand 1']
  %s0 = inlined_call_operand.<no memory space> [shape: s32[1], index: 0, kind: input, shape index: {}]
  %s1 = inlined_call_operand.<no memory space> [shape: s32[1], index: 1, kind: input, shape index: {}]
  %s2 = inlined_call_operand.vmem [shape: f32[32,32], index: 2, kind: input, shape index: {}]
  %s3 = inlined_call_operand.vmem [shape: s32[1,32], index: 3, kind: input, shape index: {}]
  %s4 = inlined_call_operand.vmem [shape: s32[32,1], index: 4, kind: input, shape index: {}]
  %s5 = inlined_call_operand.hbm [shape: f32[128,384], index: 5, kind: input, shape index: {}]
  %s6 = inlined_call_operand.vmem [shape: f32[1,128], index: 6, kind: input, shape index: {}]
  %s7 = inlined_call_operand.hbm [shape: f32[8,128], index: 7, kind: output, shape index: {}]
  %s8 = sld [smem:[#allocation0]]
  $region46: #{tpu_custom_call.1} parent=0
    _
  %s10 = ssub.s32 1, %s8
  %s11 = scalar_select 0, %s10, %s8
  %12 = sst [smem:[#allocation6]] %s0
  %13 = sst [smem:[#allocation7]] %s1
  $region1: #{tpu_custom_call.1} parent=0
    #allocation8 [shape = 'u8[196608]{0}', space=vmem, size = 0x30000, scoped, tag = 'input window, operand 5, single buffered']
    #allocation9 [shape = 's32[1]{0}', space=sflag, size = 0x4, scoped, tag = 'scoped memory for tpu_custom_call.1']
    #allocation10 [shape = 's32[1]{0}', space=sflag, size = 0x4, scoped, tag = 'scoped memory for tpu_custom_call.1']
    #allocation11 [shape = 'u8[4096]{0}', space=vmem, size = 0x1000, scoped, tag = 'output window, operand 0, single buffered']
    %14 = vsyncpa [#allocation9], 0
    %15 = vsyncpa [#allocation10], 0
    // Predicated region
    $region2: #{tpu_custom_call.1} parent=1 // pred_check
      _
    $region3: #{tpu_custom_call.1} parent=1 // pred_check_branch
      %17 = sbr.rel (0) target = $region5
    $region4: #{tpu_custom_call.1} parent=1 // pred_region
      %s18 = sld [smem:[#allocation6]]
      %s19 = sld [smem:[#allocation7]]
      %s20 = ssub.s32 %s19, 1
      %p21 = scmp.gt.s32.totalorder %s20, 0
      %s22 = scalar_select %p21, %s20, 0
      %p23 = scmp.lt.s32.totalorder 0, %s22
      %s24 = scalar_select %p23, 0, %s22
      %s25 = sadd.s32 %s18, %s24
      %s26 = smul.u32 4, %s25
      %p27 = scmp.lt.s32.totalorder %s26, 3
      %s28 = scalar_select %p27, %s26, 3
      %s29 = smul.addr %s28, 8
      %s30 = scalar_lea.vmem %s2, %s29
      %s31 = sld [smem:[#allocation6]]
      %s32 = sld [smem:[#allocation7]]
      %s33 = ssub.s32 %s32, 1
      %p34 = scmp.gt.s32.totalorder %s33, 0
      %s35 = scalar_select %p34, %s33, 0
      %p36 = scmp.lt.s32.totalorder 0, %s35
      %s37 = scalar_select %p36, 0, %s35
      %s38 = sadd.s32 %s31, %s37
      %s39 = smul.u32 4, %s38
    $region5: #{tpu_custom_call.1} parent=1 // pred_fallthru
      _
    // Predicated region
    $region6: #{tpu_custom_call.1} parent=1 // pred_check
      _
    $region7: #{tpu_custom_call.1} parent=1 // pred_check_branch
      %41 = sbr.rel (0) target = $region9
    $region8: #{tpu_custom_call.1} parent=1 // pred_region
      %s42 = sld [smem:[#allocation6]]
      %s43 = sld [smem:[#allocation7]]
      %s44 = ssub.s32 %s43, 1
      %p45 = scmp.gt.s32.totalorder %s44, 0
      %s46 = scalar_select %p45, %s44, 0
      %p47 = scmp.lt.s32.totalorder 0, %s46
      %s48 = scalar_select %p47, 0, %s46
      %s49 = sadd.s32 %s42, %s48
      %p50 = scmp.lt.s32.totalorder %s49, 0
      %s51 = scalar_select %p50, %s49, 0
      %s52 = scalar_lea.vmem %s3, %s51
      %s53 = sld [smem:[#allocation6]]
      %s54 = sld [smem:[#allocation7]]
      %s55 = ssub.s32 %s54, 1
      %p56 = scmp.gt.s32.totalorder %s55, 0
      %s57 = scalar_select %p56, %s55, 0
      %p58 = scmp.lt.s32.totalorder 0, %s57
      %s59 = scalar_select %p58, 0, %s57
      %s60 = sadd.s32 %s53, %s59
    $region9: #{tpu_custom_call.1} parent=1 // pred_fallthru
      _
    // Predicated region
    $region10: #{tpu_custom_call.1} parent=1 // pred_check
      _
    $region11: #{tpu_custom_call.1} parent=1 // pred_check_branch
      %62 = sbr.rel (0) target = $region13
    $region12: #{tpu_custom_call.1} parent=1 // pred_region
      %s63 = sld [smem:[#allocation6]]
      %s64 = sld [smem:[#allocation7]]
      %s65 = ssub.s32 %s64, 1
      %p66 = scmp.gt.s32.totalorder %s65, 0
      %s67 = scalar_select %p66, %s65, 0
      %p68 = scmp.lt.s32.totalorder 0, %s67
      %s69 = scalar_select %p68, 0, %s67
      %s70 = sadd.s32 %s63, %s69
      %s71 = smul.u32 4, %s70
      %p72 = scmp.lt.s32.totalorder %s71, 3
      %s73 = scalar_select %p72, %s71, 3
      %s74 = smul.addr %s73, 8
      %s75 = scalar_lea.vmem %s4, %s74
      %s76 = sld [smem:[#allocation6]]
      %s77 = sld [smem:[#allocation7]]
      %s78 = ssub.s32 %s77, 1
      %p79 = scmp.gt.s32.totalorder %s78, 0
      %s80 = scalar_select %p79, %s78, 0
      %p81 = scmp.lt.s32.totalorder 0, %s80
      %s82 = scalar_select %p81, 0, %s80
      %s83 = sadd.s32 %s76, %s82
      %s84 = smul.u32 4, %s83
    $region13: #{tpu_custom_call.1} parent=1 // pred_fallthru
      _
    // Predicated region
    $region14: #{tpu_custom_call.1} parent=1 // pred_check
      _
    $region15: #{tpu_custom_call.1} parent=1 // pred_check_branch
      %86 = sbr.rel (0) target = $region17
    $region16: #{tpu_custom_call.1} parent=1 // pred_region
      %s88 = ssub.s32 6144, 6144
      %89 = vsyncadd [#allocation9], %s88
      %s90 = sshll.u32 [#allocation8], 4
      %s91 = int_to_ptr.vmem [resolvable:$true] %s90
      %96 = dma.hbm_to_vmem [thread:$0]  %s5, 6144, %s91, [#allocation9], 384, 384, 24
    $region17: #{tpu_custom_call.1} parent=1 // pred_fallthru
      _
    // Predicated region
    $region18: #{tpu_custom_call.1} parent=1 // pred_check
      _
    $region19: #{tpu_custom_call.1} parent=1 // pred_check_branch
      %98 = sbr.rel (0) target = $region21
    $region20: #{tpu_custom_call.1} parent=1 // pred_region
      _
    $region21: #{tpu_custom_call.1} parent=1 // pred_fallthru
      _
    // Predicated region
    $region22: #{tpu_custom_call.1} parent=1 // pred_check
      _
    $region23: #{tpu_custom_call.1} parent=1 // pred_check_branch
      %100 = sbr.rel (0) target = $region25
    $region24: #{tpu_custom_call.1} parent=1 // pred_region
      %101 = dma.done [#allocation9], 6144
    $region25: #{tpu_custom_call.1} parent=1 // pred_fallthru
      _
    %s102 = sld [smem:[#allocation6]]
    %s103 = sld [smem:[#allocation7]]
    %s104 = ssub.s32 %s103, 1
    %p105 = scmp.gt.s32.totalorder %s104, 0
    %s106 = scalar_select %p105, %s104, 0
    %p107 = scmp.lt.s32.totalorder 0, %s106
    %s108 = scalar_select %p107, 0, %s106
    %s109 = sadd.s32 %s102, %s108
    %s110 = smul.u32 4, %s109
    %p111 = scmp.lt.s32.totalorder %s110, 3
    %s112 = scalar_select %p111, %s110, 3
    %s113 = smul.addr %s112, 8
    %s114 = scalar_lea.vmem %s2, %s113
    %s115 = sld [smem:[#allocation6]]
    %s116 = sld [smem:[#allocation7]]
    %s117 = ssub.s32 %s116, 1
    %p118 = scmp.gt.s32.totalorder %s117, 0
    %s119 = scalar_select %p118, %s117, 0
    %p120 = scmp.lt.s32.totalorder 0, %s119
    %s121 = scalar_select %p120, 0, %s119
    %s122 = sadd.s32 %s115, %s121
    %p123 = scmp.lt.s32.totalorder %s122, 0
    %s124 = scalar_select %p123, %s122, 0
    %s125 = scalar_lea.vmem %s3, %s124
    %s126 = sld [smem:[#allocation6]]
    %s127 = sld [smem:[#allocation7]]
    %s128 = ssub.s32 %s127, 1
    %p129 = scmp.gt.s32.totalorder %s128, 0
    %s130 = scalar_select %p129, %s128, 0
    %p131 = scmp.lt.s32.totalorder 0, %s130
    %s132 = scalar_select %p131, 0, %s130
    %s133 = sadd.s32 %s126, %s132
    %s134 = smul.u32 4, %s133
    %p135 = scmp.lt.s32.totalorder %s134, 3
    %s136 = scalar_select %p135, %s134, 3
    %s137 = smul.addr %s136, 8
    %s138 = scalar_lea.vmem %s4, %s137
    %s139 = sld [smem:[#allocation6]]
    %s140 = sld [smem:[#allocation7]]
    %s141 = ssub.s32 %s140, 1
    %p142 = scmp.gt.s32.totalorder %s141, 0
    %s143 = scalar_select %p142, %s141, 0
    %p144 = scmp.lt.s32.totalorder 0, %s143
    %s145 = scalar_select %p144, 0, %s143
    %s146 = sadd.s32 %s139, %s145
    %s147 = smul.u32 4, %s146
    %p148 = scmp.lt.s32.totalorder %s147, 3
    %s149 = scalar_select %p148, %s147, 3
    %s150 = smul.addr %s149, 8
    %s151 = scalar_lea.vmem %s2, %s150
    %s152 = sld [smem:[#allocation6]]
    %s153 = sld [smem:[#allocation7]]
    %s154 = ssub.s32 %s153, 1
    %p155 = scmp.gt.s32.totalorder %s154, 0
    %s156 = scalar_select %p155, %s154, 0
    %p157 = scmp.lt.s32.totalorder 0, %s156
    %s158 = scalar_select %p157, 0, %s156
    %s159 = sadd.s32 %s152, %s158
    %s160 = smul.u32 4, %s159
    %s161 = sld [smem:[#allocation6]]
    %s162 = sld [smem:[#allocation7]]
    %s163 = ssub.s32 %s162, 1
    %p164 = scmp.gt.s32.totalorder %s163, 0
    %s165 = scalar_select %p164, %s163, 0
    %p166 = scmp.lt.s32.totalorder 0, %s165
    %s167 = scalar_select %p166, 0, %s165
    %s168 = sadd.s32 %s161, %s167
    %p169 = scmp.lt.s32.totalorder %s168, 0
    %s170 = scalar_select %p169, %s168, 0
    %s171 = scalar_lea.vmem %s3, %s170
    %s172 = sld [smem:[#allocation6]]
    %s173 = sld [smem:[#allocation7]]
    %s174 = ssub.s32 %s173, 1
    %p175 = scmp.gt.s32.totalorder %s174, 0
    %s176 = scalar_select %p175, %s174, 0
    %p177 = scmp.lt.s32.totalorder 0, %s176
    %s178 = scalar_select %p177, 0, %s176
    %s179 = sadd.s32 %s172, %s178
    %s180 = sld [smem:[#allocation6]]
    %s181 = sld [smem:[#allocation7]]
    %s182 = ssub.s32 %s181, 1
    %p183 = scmp.gt.s32.totalorder %s182, 0
    %s184 = scalar_select %p183, %s182, 0
    %p185 = scmp.lt.s32.totalorder 0, %s184
    %s186 = scalar_select %p185, 0, %s184
    %s187 = sadd.s32 %s180, %s186
    %s188 = smul.u32 4, %s187
    %p189 = scmp.lt.s32.totalorder %s188, 3
    %s190 = scalar_select %p189, %s188, 3
    %s191 = smul.addr %s190, 8
    %s192 = scalar_lea.vmem %s4, %s191
    %s193 = sld [smem:[#allocation6]]
    %s194 = sld [smem:[#allocation7]]
    %s195 = ssub.s32 %s194, 1
    %p196 = scmp.gt.s32.totalorder %s195, 0
    %s197 = scalar_select %p196, %s195, 0
    %p198 = scmp.lt.s32.totalorder 0, %s197
    %s199 = scalar_select %p198, 0, %s197
    %s200 = sadd.s32 %s193, %s199
    %s201 = smul.u32 4, %s200
    %s202 = smul.u32 0, 8
    %p203 = scmp.eq.s32.totalorder 0, 0
    // Predicated region
    $region26: #{tpu_custom_call.1} parent=1 // pred_check
      %p204 = pneg %p203
    $region27: #{tpu_custom_call.1} parent=1 // pred_check_branch
      %206 = sbr.rel (%p204) target = $region29
    $region28: #{tpu_custom_call.1} parent=1 // pred_region
      %207 = vst [vmem:[#allocation2] sm:$0xff] 0.0
      %vm208 = vcmask 261120
      %209 = vst.msk [vmem:[#allocation3] sm:$0xff] %vm208, -inf
      %210 = vst.msk [vmem:[#allocation4] sm:$0xff] %vm208, inf
    $region29: #{tpu_custom_call.1} parent=1 // pred_fallthru
      _
    %s211 = sld [smem:[#allocation7]]
    %p212 = scmp.lt.s32.totalorder 0, %s211
    // Predicated region
    $region30: #{tpu_custom_call.1} parent=1 // pred_check
      %p213 = pneg %p212
    $region31: #{tpu_custom_call.1} parent=1 // pred_check_branch
      %215 = sbr.rel (%p213) target = $region33
    $region32: #{tpu_custom_call.1} parent=1 // pred_region
      %v216 = vld [vmem:[%s151] sm:$0xff]
      %v217 = vld [vmem:[%s151 + $0x8] sm:$0xff]
      %v218 = vld [vmem:[%s151 + $0x10] sm:$0xff]
      %v219 = vld [vmem:[%s151 + $0x18] sm:$0xff]
      %v220 = vlaneseq
      %v221 = vshrl.u32 %v220, 7
      %v222 = vstv %s202
      %v223 = vadd.s32 %v221, %v222
      %v224 = vld [vmem:[%s171] sm:$0x1]
      %v225 = vlaneseq
      %v226 = vshrl.u32 %v225, 7
      %v227 = vsub.s32 0, %v226
      %v228 = vrot.slane %v224, %v227
      %vm229 = vcmp.eq.s32.totalorder %v223, %v228
      %v230 = vsel %vm229, 1, 0
      %v231 = vcvt.s32.f32 %v230
      %v232 = vlaneseq
      %v233 = vand.u32 %v232, 127
      %vm234 = vcmp.eq.s32.totalorder %v233, 0
      %v235 = vsel %vm234, 1, 0
      %v236 = vcvt.s32.f32 %v235
      %v237 = vmul.f32 %v216, %v216
      %v238 = vmul.f32 %v217, %v217
      %v239 = vmul.f32 %v218, %v218
      %v240 = vmul.f32 %v219, %v219
      %245 = vrot.lane.b32.xlu0 %v237, 32
      %v246 = vpop.permute.xlu0 %245
      %247 = vrot.lane.b32.xlu0 %v238, 32
      %v248 = vpop.permute.xlu0 %247
      %249 = vrot.lane.b32.xlu0 %v239, 32
      %v250 = vpop.permute.xlu0 %249
      %251 = vrot.lane.b32.xlu0 %v240, 32
      %v252 = vpop.permute.xlu0 %251
      %258 = vrot.lane.b32.xlu0 %v236, 64
      %v259 = vpop.permute.xlu0 %258
      %vm261 = vcmask 261120
      %v262 = vsel %vm261, %v216, %v246
      %v263 = vsel %vm261, %v217, %v248
      %v264 = vsel %vm261, %v218, %v250
      %v265 = vsel %vm261, %v219, %v252
      %vm266 = vcmask 523264
      %v267 = vsel %vm266, %v262, %v259
      %v268 = vsel %vm266, %v263, %v259
      %v269 = vsel %vm266, %v264, %v259
      %v270 = vsel %vm266, %v265, %v259
      %v271 = vld [vmem:[#allocation2] sm:$0xff]
      %v273 = vsel %vm261, %v231, 0
      %275 = vmatprep.subr.mxu0 0.0
      %276 = vmatpush1.msra.mxu0 0.0
      %277 = vmatprep.subr.mxu0 0.0
      %278 = vmatpush1.msra.mxu0 0.0
      %279 = vmatprep.subr.mxu0 0.0
      %280 = vmatpush1.msra.mxu0 0.0
      %281 = vmatprep.subr.mxu0 0.0
      %282 = vmatpush1.msra.mxu0 0.0
      %283 = vmatprep.subr.mxu0 0.0
      %284 = vmatpush1.msra.mxu0 0.0
      %285 = vmatprep.subr.mxu0 0.0
      %286 = vmatpush1.msra.mxu0 0.0
      %287 = vmatprep.subr.mxu0 0.0
      %288 = vmatpush1.msra.mxu0 0.0
      %289 = vmatprep.subr.mxu0 0.0
      %290 = vmatpush1.msra.mxu0 0.0
      %291 = vmatprep.subr.mxu0 0.0
      %292 = vmatpush1.msra.mxu0 0.0
      %293 = vmatprep.subr.mxu0 0.0
      %294 = vmatpush1.msra.mxu0 0.0
      %295 = vmatprep.subr.mxu0 0.0
      %296 = vmatpush1.msra.mxu0 0.0
      %297 = vmatprep.subr.mxu0 0.0
      %298 = vmatpush1.msra.mxu0 0.0
      %299 = vmatprep.subr.mxu0 0.0
      %300 = vmatpush1.msra.mxu0 %v270
      %301 = vmatprep.subr.mxu0 0.0
      %302 = vmatpush1.msra.mxu0 %v269
      %303 = vmatprep.subr.mxu0 0.0
      %304 = vmatpush1.msra.mxu0 %v268
      %305 = vmatprep.subr.mxu0 0.0
      %306 = vmatpush1.msra.mxu0 %v267
      %307 = vmatprep.subr.mxu0 0.0
      %308 = vmatpush2.msra.mxu0 0.0
      %309 = vmatprep.subr.mxu0 0.0
      %310 = vmatpush2.msra.mxu0 0.0
      %311 = vmatprep.subr.mxu0 0.0
      %312 = vmatpush2.msra.mxu0 0.0
      %313 = vmatprep.subr.mxu0 0.0
      %314 = vmatpush2.msra.mxu0 0.0
      %315 = vmatprep.subr.mxu0 0.0
      %316 = vmatpush2.msra.mxu0 0.0
      %317 = vmatprep.subr.mxu0 0.0
      %318 = vmatpush2.msra.mxu0 0.0
      %319 = vmatprep.subr.mxu0 0.0
      %320 = vmatpush2.msra.mxu0 0.0
      %321 = vmatprep.subr.mxu0 0.0
      %322 = vmatpush2.msra.mxu0 0.0
      %323 = vmatprep.subr.mxu0 0.0
      %324 = vmatpush2.msra.mxu0 0.0
      %325 = vmatprep.subr.mxu0 0.0
      %326 = vmatpush2.msra.mxu0 0.0
      %327 = vmatprep.subr.mxu0 0.0
      %328 = vmatpush2.msra.mxu0 0.0
      %329 = vmatprep.subr.mxu0 0.0
      %330 = vmatpush2.msra.mxu0 0.0
      %331 = vmatprep.subr.mxu0 0.0
      %332 = vmatpush2.msra.mxu0 0.0
      %333 = vmatprep.subr.mxu0 0.0
      %334 = vmatpush2.msra.mxu0 0.0
      %335 = vmatprep.subr.mxu0 0.0
      %336 = vmatpush2.msra.mxu0 0.0
      %337 = vmatprep.subr.mxu0 0.0
      %338 = vmatpush2.msra.mxu0 0.0
      %339 = vmatprep.mubr.f32.mxu0 0.0
      %340 = vmatmul.mubr.f32.gmra.mxu0 %v273
      %v341 = vpop.f32.mrf.mxu0
      %v342 = vadd.f32 0.0, %v341
      %v343 = vpop.f32.mrf.mxu0
      %344 = vdwg.mxu0
      %v345 = vadd.f32 %v271, %v342
      %346 = vst [vmem:[#allocation2] sm:$0xff] %v345
      %v347 = vadd.s32 %v222, 1
      %v348 = vadd.s32 %v222, 2
      %v349 = vadd.s32 %v222, 3
      %v350 = vadd.s32 %v222, 4
      %v351 = vadd.s32 %v222, 5
      %v352 = vadd.s32 %v222, 6
      %v353 = vadd.s32 %v222, 7
      %v354 = vld [vmem:[%s151] sm:$0xff]
      %v355 = vld [vmem:[%s151 + $0x8] sm:$0xff]
      %v356 = vld [vmem:[%s151 + $0x10] sm:$0xff]
      %v357 = vld [vmem:[%s151 + $0x18] sm:$0xff]
      %v358 = vld [vmem:[%s192] sm:$0xff]
      %v359 = vld [vmem:[%s192 + $0x8] sm:$0xff]
      %v360 = vld [vmem:[%s192 + $0x10] sm:$0xff]
      %v361 = vld [vmem:[%s192 + $0x18] sm:$0xff]
      %vm362 = vcmp.eq.s32.totalorder %v358, %v222
      %vm363 = vcmp.eq.s32.totalorder %v359, %v222
      %vm364 = vcmp.eq.s32.totalorder %v360, %v222
      %vm365 = vcmp.eq.s32.totalorder %v361, %v222
      %vm366 = vcmp.eq.s32.totalorder %v358, %v347
      %vm367 = vcmp.eq.s32.totalorder %v359, %v347
      %vm368 = vcmp.eq.s32.totalorder %v360, %v347
      %vm369 = vcmp.eq.s32.totalorder %v361, %v347
      %vm370 = vcmp.eq.s32.totalorder %v358, %v348
      %vm371 = vcmp.eq.s32.totalorder %v359, %v348
      %vm372 = vcmp.eq.s32.totalorder %v360, %v348
      %vm373 = vcmp.eq.s32.totalorder %v361, %v348
      %vm374 = vcmp.eq.s32.totalorder %v358, %v349
      %vm375 = vcmp.eq.s32.totalorder %v359, %v349
      %vm376 = vcmp.eq.s32.totalorder %v360, %v349
      %vm377 = vcmp.eq.s32.totalorder %v361, %v349
      %vm378 = vcmp.eq.s32.totalorder %v358, %v350
      %vm379 = vcmp.eq.s32.totalorder %v359, %v350
      %vm380 = vcmp.eq.s32.totalorder %v360, %v350
      %vm381 = vcmp.eq.s32.totalorder %v361, %v350
      %vm382 = vcmp.eq.s32.totalorder %v358, %v351
      %vm383 = vcmp.eq.s32.totalorder %v359, %v351
      %vm384 = vcmp.eq.s32.totalorder %v360, %v351
      %vm385 = vcmp.eq.s32.totalorder %v361, %v351
      %vm386 = vcmp.eq.s32.totalorder %v358, %v352
      %vm387 = vcmp.eq.s32.totalorder %v359, %v352
      %vm388 = vcmp.eq.s32.totalorder %v360, %v352
      %vm389 = vcmp.eq.s32.totalorder %v361, %v352
      %vm390 = vcmp.eq.s32.totalorder %v358, %v353
      %vm391 = vcmp.eq.s32.totalorder %v359, %v353
      %vm392 = vcmp.eq.s32.totalorder %v360, %v353
      %vm393 = vcmp.eq.s32.totalorder %v361, %v353
      %v394 = vld [vmem:[#allocation3] sm:$0xff]
      %v395 = vsel %vm362, 1, 0
      %v396 = vsel %vm363, 1, 0
      %v397 = vsel %vm364, 1, 0
      %v398 = vsel %vm365, 1, 0
      %v399 = vsel %vm366, 1, 0
      %v400 = vsel %vm367, 1, 0
      %v401 = vsel %vm368, 1, 0
      %v402 = vsel %vm369, 1, 0
      %v403 = vsel %vm370, 1, 0
      %v404 = vsel %vm371, 1, 0
      %v405 = vsel %vm372, 1, 0
      %v406 = vsel %vm373, 1, 0
      %v407 = vsel %vm374, 1, 0
      %v408 = vsel %vm375, 1, 0
      %v409 = vsel %vm376, 1, 0
      %v410 = vsel %vm377, 1, 0
      %v411 = vsel %vm378, 1, 0
      %v412 = vsel %vm379, 1, 0
      %v413 = vsel %vm380, 1, 0
      %v414 = vsel %vm381, 1, 0
      %v415 = vsel %vm382, 1, 0
      %v416 = vsel %vm383, 1, 0
      %v417 = vsel %vm384, 1, 0
      %v418 = vsel %vm385, 1, 0
      %v419 = vsel %vm386, 1, 0
      %v420 = vsel %vm387, 1, 0
      %v421 = vsel %vm388, 1, 0
      %v422 = vsel %vm389, 1, 0
      %v423 = vsel %vm390, 1, 0
      %v424 = vsel %vm391, 1, 0
      %v425 = vsel %vm392, 1, 0
      %v426 = vsel %vm393, 1, 0
      %427 = vset.pattern.permute.xlu0 0
      %428 = vperm.xlu0 %427, %v395
      %v429 = vpop.permute.xlu0 %428
      %430 = vset.pattern.permute.xlu0 0
      %431 = vperm.xlu0 %430, %v396
      %v432 = vpop.permute.xlu0 %431
      %433 = vset.pattern.permute.xlu0 0
      %434 = vperm.xlu0 %433, %v397
      %v435 = vpop.permute.xlu0 %434
      %436 = vset.pattern.permute.xlu0 0
      %437 = vperm.xlu0 %436, %v398
      %v438 = vpop.permute.xlu0 %437
      %439 = vset.pattern.permute.xlu0 0
      %440 = vperm.xlu0 %439, %v399
      %v441 = vpop.permute.xlu0 %440
      %442 = vset.pattern.permute.xlu0 0
      %443 = vperm.xlu0 %442, %v400
      %v444 = vpop.permute.xlu0 %443
      %445 = vset.pattern.permute.xlu0 0
      %446 = vperm.xlu0 %445, %v401
      %v447 = vpop.permute.xlu0 %446
      %448 = vset.pattern.permute.xlu0 0
      %449 = vperm.xlu0 %448, %v402
      %v450 = vpop.permute.xlu0 %449
      %451 = vset.pattern.permute.xlu0 0
      %452 = vperm.xlu0 %451, %v403
      %v453 = vpop.permute.xlu0 %452
      %454 = vset.pattern.permute.xlu0 0
      %455 = vperm.xlu0 %454, %v404
      %v456 = vpop.permute.xlu0 %455
      %457 = vset.pattern.permute.xlu0 0
      %458 = vperm.xlu0 %457, %v405
      %v459 = vpop.permute.xlu0 %458
      %460 = vset.pattern.permute.xlu0 0
      %461 = vperm.xlu0 %460, %v406
      %v462 = vpop.permute.xlu0 %461
      %463 = vset.pattern.permute.xlu0 0
      %464 = vperm.xlu0 %463, %v407
      %v465 = vpop.permute.xlu0 %464
      %466 = vset.pattern.permute.xlu0 0
      %467 = vperm.xlu0 %466, %v408
      %v468 = vpop.permute.xlu0 %467
      %469 = vset.pattern.permute.xlu0 0
      %470 = vperm.xlu0 %469, %v409
      %v471 = vpop.permute.xlu0 %470
      %472 = vset.pattern.permute.xlu0 0
      %473 = vperm.xlu0 %472, %v410
      %v474 = vpop.permute.xlu0 %473
      %475 = vset.pattern.permute.xlu0 0
      %476 = vperm.xlu0 %475, %v411
      %v477 = vpop.permute.xlu0 %476
      %478 = vset.pattern.permute.xlu0 0
      %479 = vperm.xlu0 %478, %v412
      %v480 = vpop.permute.xlu0 %479
      %481 = vset.pattern.permute.xlu0 0
      %482 = vperm.xlu0 %481, %v413
      %v483 = vpop.permute.xlu0 %482
      %484 = vset.pattern.permute.xlu0 0
      %485 = vperm.xlu0 %484, %v414
      %v486 = vpop.permute.xlu0 %485
      %487 = vset.pattern.permute.xlu0 0
      %488 = vperm.xlu0 %487, %v415
      %v489 = vpop.permute.xlu0 %488
      %490 = vset.pattern.permute.xlu0 0
      %491 = vperm.xlu0 %490, %v416
      %v492 = vpop.permute.xlu0 %491
      %493 = vset.pattern.permute.xlu0 0
      %494 = vperm.xlu0 %493, %v417
      %v495 = vpop.permute.xlu0 %494
      %496 = vset.pattern.permute.xlu0 0
      %497 = vperm.xlu0 %496, %v418
      %v498 = vpop.permute.xlu0 %497
      %499 = vset.pattern.permute.xlu0 0
      %500 = vperm.xlu0 %499, %v419
      %v501 = vpop.permute.xlu0 %500
      %502 = vset.pattern.permute.xlu0 0
      %503 = vperm.xlu0 %502, %v420
      %v504 = vpop.permute.xlu0 %503
      %505 = vset.pattern.permute.xlu0 0
      %506 = vperm.xlu0 %505, %v421
      %v507 = vpop.permute.xlu0 %506
      %508 = vset.pattern.permute.xlu0 0
      %509 = vperm.xlu0 %508, %v422
      %v510 = vpop.permute.xlu0 %509
      %511 = vset.pattern.permute.xlu0 0
      %512 = vperm.xlu0 %511, %v423
      %v513 = vpop.permute.xlu0 %512
      %514 = vset.pattern.permute.xlu0 0
      %515 = vperm.xlu0 %514, %v424
      %v516 = vpop.permute.xlu0 %515
      %517 = vset.pattern.permute.xlu0 0
      %518 = vperm.xlu0 %517, %v425
      %v519 = vpop.permute.xlu0 %518
      %520 = vset.pattern.permute.xlu0 0
      %521 = vperm.xlu0 %520, %v426
      %v522 = vpop.permute.xlu0 %521
      %vm523 = vcmp.eq.s32.totalorder %v429, 1
      %vm524 = vcmp.eq.s32.totalorder %v432, 1
      %vm525 = vcmp.eq.s32.totalorder %v435, 1
      %vm526 = vcmp.eq.s32.totalorder %v438, 1
      %vm527 = vcmp.eq.s32.totalorder %v441, 1
      %vm528 = vcmp.eq.s32.totalorder %v444, 1
      %vm529 = vcmp.eq.s32.totalorder %v447, 1
      %vm530 = vcmp.eq.s32.totalorder %v450, 1
      %vm531 = vcmp.eq.s32.totalorder %v453, 1
      %vm532 = vcmp.eq.s32.totalorder %v456, 1
      %vm533 = vcmp.eq.s32.totalorder %v459, 1
      %vm534 = vcmp.eq.s32.totalorder %v462, 1
      %vm535 = vcmp.eq.s32.totalorder %v465, 1
      %vm536 = vcmp.eq.s32.totalorder %v468, 1
      %vm537 = vcmp.eq.s32.totalorder %v471, 1
      %vm538 = vcmp.eq.s32.totalorder %v474, 1
      %vm539 = vcmp.eq.s32.totalorder %v477, 1
      %vm540 = vcmp.eq.s32.totalorder %v480, 1
      %vm541 = vcmp.eq.s32.totalorder %v483, 1
      %vm542 = vcmp.eq.s32.totalorder %v486, 1
      %vm543 = vcmp.eq.s32.totalorder %v489, 1
      %vm544 = vcmp.eq.s32.totalorder %v492, 1
      %vm545 = vcmp.eq.s32.totalorder %v495, 1
      %vm546 = vcmp.eq.s32.totalorder %v498, 1
      %vm547 = vcmp.eq.s32.totalorder %v501, 1
      %vm548 = vcmp.eq.s32.totalorder %v504, 1
      %vm549 = vcmp.eq.s32.totalorder %v507, 1
      %vm550 = vcmp.eq.s32.totalorder %v510, 1
      %vm551 = vcmp.eq.s32.totalorder %v513, 1
      %vm552 = vcmp.eq.s32.totalorder %v516, 1
      %vm553 = vcmp.eq.s32.totalorder %v519, 1
      %vm554 = vcmp.eq.s32.totalorder %v522, 1
      %v555 = vsel %vm523, %v354, -inf
      %v556 = vsel %vm524, %v355, -inf
      %v557 = vsel %vm525, %v356, -inf
      %v558 = vsel %vm526, %v357, -inf
      %v559 = vsel %vm527, %v354, -inf
      %v560 = vsel %vm528, %v355, -inf
      %v561 = vsel %vm529, %v356, -inf
      %v562 = vsel %vm530, %v357, -inf
      %v563 = vsel %vm531, %v354, -inf
      %v564 = vsel %vm532, %v355, -inf
      %v565 = vsel %vm533, %v356, -inf
      %v566 = vsel %vm534, %v357, -inf
      %v567 = vsel %vm535, %v354, -inf
      %v568 = vsel %vm536, %v355, -inf
      %v569 = vsel %vm537, %v356, -inf
      %v570 = vsel %vm538, %v357, -inf
      %v571 = vsel %vm539, %v354, -inf
      %v572 = vsel %vm540, %v355, -inf
      %v573 = vsel %vm541, %v356, -inf
      %v574 = vsel %vm542, %v357, -inf
      %v575 = vsel %vm543, %v354, -inf
      %v576 = vsel %vm544, %v355, -inf
      %v577 = vsel %vm545, %v356, -inf
      %v578 = vsel %vm546, %v357, -inf
      %v579 = vsel %vm547, %v354, -inf
      %v580 = vsel %vm548, %v355, -inf
      %v581 = vsel %vm549, %v356, -inf
      %v582 = vsel %vm550, %v357, -inf
      %v583 = vsel %vm551, %v354, -inf
      %v584 = vsel %vm552, %v355, -inf
      %v585 = vsel %vm553, %v356, -inf
      %v586 = vsel %vm554, %v357, -inf
      %v587 = vsel %vm261, %v555, -inf
      %v588 = vsel %vm261, %v556, -inf
      %v589 = vmax.f32 %v587, %v588
      %v590 = vsel %vm261, %v557, -inf
      %v591 = vmax.f32 %v589, %v590
      %v592 = vsel %vm261, %v558, -inf
      %v593 = vmax.f32 %v591, %v592
      %v594 = vrot.slane %v593, 4
      %v595 = vmax.f32 %v593, %v594
      %v596 = vrot.slane %v595, 2
      %v597 = vmax.f32 %v595, %v596
      %v598 = vrot.slane %v597, 1
      %v599 = vmax.f32 %v597, %v598
      %v600 = vsel %vm261, %v559, -inf
      %v601 = vsel %vm261, %v560, -inf
      %v602 = vmax.f32 %v600, %v601
      %v603 = vsel %vm261, %v561, -inf
      %v604 = vmax.f32 %v602, %v603
      %v605 = vsel %vm261, %v562, -inf
      %v606 = vmax.f32 %v604, %v605
      %v607 = vrot.slane %v606, 4
      %v608 = vmax.f32 %v606, %v607
      %v609 = vrot.slane %v608, 2
      %v610 = vmax.f32 %v608, %v609
      %v611 = vrot.slane %v610, 1
      %v612 = vmax.f32 %v610, %v611
      %v613 = vsel %vm261, %v563, -inf
      %v614 = vsel %vm261, %v564, -inf
      %v615 = vmax.f32 %v613, %v614
      %v616 = vsel %vm261, %v565, -inf
      %v617 = vmax.f32 %v615, %v616
      %v618 = vsel %vm261, %v566, -inf
      %v619 = vmax.f32 %v617, %v618
      %v620 = vrot.slane %v619, 4
      %v621 = vmax.f32 %v619, %v620
      %v622 = vrot.slane %v621, 2
      %v623 = vmax.f32 %v621, %v622
      %v624 = vrot.slane %v623, 1
      %v625 = vmax.f32 %v623, %v624
      %v626 = vsel %vm261, %v567, -inf
      %v627 = vsel %vm261, %v568, -inf
      %v628 = vmax.f32 %v626, %v627
      %v629 = vsel %vm261, %v569, -inf
      %v630 = vmax.f32 %v628, %v629
      %v631 = vsel %vm261, %v570, -inf
      %v632 = vmax.f32 %v630, %v631
      %v633 = vrot.slane %v632, 4
      %v634 = vmax.f32 %v632, %v633
      %v635 = vrot.slane %v634, 2
      %v636 = vmax.f32 %v634, %v635
      %v637 = vrot.slane %v636, 1
      %v638 = vmax.f32 %v636, %v637
      %v639 = vsel %vm261, %v571, -inf
      %v640 = vsel %vm261, %v572, -inf
      %v641 = vmax.f32 %v639, %v640
      %v642 = vsel %vm261, %v573, -inf
      %v643 = vmax.f32 %v641, %v642
      %v644 = vsel %vm261, %v574, -inf
      %v645 = vmax.f32 %v643, %v644
      %v646 = vrot.slane %v645, 4
      %v647 = vmax.f32 %v645, %v646
      %v648 = vrot.slane %v647, 2
      %v649 = vmax.f32 %v647, %v648
      %v650 = vrot.slane %v649, 1
      %v651 = vmax.f32 %v649, %v650
      %v652 = vsel %vm261, %v575, -inf
      %v653 = vsel %vm261, %v576, -inf
      %v654 = vmax.f32 %v652, %v653
      %v655 = vsel %vm261, %v577, -inf
      %v656 = vmax.f32 %v654, %v655
      %v657 = vsel %vm261, %v578, -inf
      %v658 = vmax.f32 %v656, %v657
      %v659 = vrot.slane %v658, 4
      %v660 = vmax.f32 %v658, %v659
      %v661 = vrot.slane %v660, 2
      %v662 = vmax.f32 %v660, %v661
      %v663 = vrot.slane %v662, 1
      %v664 = vmax.f32 %v662, %v663
      %v665 = vsel %vm261, %v579, -inf
      %v666 = vsel %vm261, %v580, -inf
      %v667 = vmax.f32 %v665, %v666
      %v668 = vsel %vm261, %v581, -inf
      %v669 = vmax.f32 %v667, %v668
      %v670 = vsel %vm261, %v582, -inf
      %v671 = vmax.f32 %v669, %v670
      %v672 = vrot.slane %v671, 4
      %v673 = vmax.f32 %v671, %v672
      %v674 = vrot.slane %v673, 2
      %v675 = vmax.f32 %v673, %v674
      %v676 = vrot.slane %v675, 1
      %v677 = vmax.f32 %v675, %v676
      %v678 = vsel %vm261, %v583, -inf
      %v679 = vsel %vm261, %v584, -inf
      %v680 = vmax.f32 %v678, %v679
      %v681 = vsel %vm261, %v585, -inf
      %v682 = vmax.f32 %v680, %v681
      %v683 = vsel %vm261, %v586, -inf
      %v684 = vmax.f32 %v682, %v683
      %v685 = vrot.slane %v684, 4
      %v686 = vmax.f32 %v684, %v685
      %v687 = vrot.slane %v686, 2
      %v688 = vmax.f32 %v686, %v687
      %v689 = vrot.slane %v688, 1
      %v690 = vmax.f32 %v688, %v689
      %vm699 = vcmask 1041409
      %v700 = vsel %vm699, %v612, %v599
      %vm701 = vcmask 1042434
      %v702 = vsel %vm701, %v625, %v700
      %vm703 = vcmask 1043459
      %v704 = vsel %vm703, %v638, %v702
      %vm705 = vcmask 1044484
      %v706 = vsel %vm705, %v651, %v704
      %vm707 = vcmask 1045509
      %v708 = vsel %vm707, %v664, %v706
      %vm709 = vcmask 1046534
      %v710 = vsel %vm709, %v677, %v708
      %vm711 = vcmask 1047559
      %v712 = vsel %vm711, %v690, %v710
      %v714 = vmax.f32 %v394, %v712
      %715 = vst.msk [vmem:[#allocation3] sm:$0xff] %vm261, %v714
      %v716 = vld [vmem:[#allocation4] sm:$0xff]
      %v717 = vsel %vm523, %v354, inf
      %v718 = vsel %vm524, %v355, inf
      %v719 = vsel %vm525, %v356, inf
      %v720 = vsel %vm526, %v357, inf
      %v721 = vsel %vm527, %v354, inf
      %v722 = vsel %vm528, %v355, inf
      %v723 = vsel %vm529, %v356, inf
      %v724 = vsel %vm530, %v357, inf
      %v725 = vsel %vm531, %v354, inf
      %v726 = vsel %vm532, %v355, inf
      %v727 = vsel %vm533, %v356, inf
      %v728 = vsel %vm534, %v357, inf
      %v729 = vsel %vm535, %v354, inf
      %v730 = vsel %vm536, %v355, inf
      %v731 = vsel %vm537, %v356, inf
      %v732 = vsel %vm538, %v357, inf
      %v733 = vsel %vm539, %v354, inf
      %v734 = vsel %vm540, %v355, inf
      %v735 = vsel %vm541, %v356, inf
      %v736 = vsel %vm542, %v357, inf
      %v737 = vsel %vm543, %v354, inf
      %v738 = vsel %vm544, %v355, inf
      %v739 = vsel %vm545, %v356, inf
      %v740 = vsel %vm546, %v357, inf
      %v741 = vsel %vm547, %v354, inf
      %v742 = vsel %vm548, %v355, inf
      %v743 = vsel %vm549, %v356, inf
      %v744 = vsel %vm550, %v357, inf
      %v745 = vsel %vm551, %v354, inf
      %v746 = vsel %vm552, %v355, inf
      %v747 = vsel %vm553, %v356, inf
      %v748 = vsel %vm554, %v357, inf
      %v749 = vsel %vm261, %v717, inf
      %v750 = vsel %vm261, %v718, inf
      %v751 = vmin.f32 %v749, %v750
      %v752 = vsel %vm261, %v719, inf
      %v753 = vmin.f32 %v751, %v752
      %v754 = vsel %vm261, %v720, inf
      %v755 = vmin.f32 %v753, %v754
      %v756 = vrot.slane %v755, 4
      %v757 = vmin.f32 %v755, %v756
      %v758 = vrot.slane %v757, 2
      %v759 = vmin.f32 %v757, %v758
      %v760 = vrot.slane %v759, 1
      %v761 = vmin.f32 %v759, %v760
      %v762 = vsel %vm261, %v721, inf
      %v763 = vsel %vm261, %v722, inf
      %v764 = vmin.f32 %v762, %v763
      %v765 = vsel %vm261, %v723, inf
      %v766 = vmin.f32 %v764, %v765
      %v767 = vsel %vm261, %v724, inf
      %v768 = vmin.f32 %v766, %v767
      %v769 = vrot.slane %v768, 4
      %v770 = vmin.f32 %v768, %v769
      %v771 = vrot.slane %v770, 2
      %v772 = vmin.f32 %v770, %v771
      %v773 = vrot.slane %v772, 1
      %v774 = vmin.f32 %v772, %v773
      %v775 = vsel %vm261, %v725, inf
      %v776 = vsel %vm261, %v726, inf
      %v777 = vmin.f32 %v775, %v776
      %v778 = vsel %vm261, %v727, inf
      %v779 = vmin.f32 %v777, %v778
      %v780 = vsel %vm261, %v728, inf
      %v781 = vmin.f32 %v779, %v780
      %v782 = vrot.slane %v781, 4
      %v783 = vmin.f32 %v781, %v782
      %v784 = vrot.slane %v783, 2
      %v785 = vmin.f32 %v783, %v784
      %v786 = vrot.slane %v785, 1
      %v787 = vmin.f32 %v785, %v786
      %v788 = vsel %vm261, %v729, inf
      %v789 = vsel %vm261, %v730, inf
      %v790 = vmin.f32 %v788, %v789
      %v791 = vsel %vm261, %v731, inf
      %v792 = vmin.f32 %v790, %v791
      %v793 = vsel %vm261, %v732, inf
      %v794 = vmin.f32 %v792, %v793
      %v795 = vrot.slane %v794, 4
      %v796 = vmin.f32 %v794, %v795
      %v797 = vrot.slane %v796, 2
      %v798 = vmin.f32 %v796, %v797
      %v799 = vrot.slane %v798, 1
      %v800 = vmin.f32 %v798, %v799
      %v801 = vsel %vm261, %v733, inf
      %v802 = vsel %vm261, %v734, inf
      %v803 = vmin.f32 %v801, %v802
      %v804 = vsel %vm261, %v735, inf
      %v805 = vmin.f32 %v803, %v804
      %v806 = vsel %vm261, %v736, inf
      %v807 = vmin.f32 %v805, %v806
      %v808 = vrot.slane %v807, 4
      %v809 = vmin.f32 %v807, %v808
      %v810 = vrot.slane %v809, 2
      %v811 = vmin.f32 %v809, %v810
      %v812 = vrot.slane %v811, 1
      %v813 = vmin.f32 %v811, %v812
      %v814 = vsel %vm261, %v737, inf
      %v815 = vsel %vm261, %v738, inf
      %v816 = vmin.f32 %v814, %v815
      %v817 = vsel %vm261, %v739, inf
      %v818 = vmin.f32 %v816, %v817
      %v819 = vsel %vm261, %v740, inf
      %v820 = vmin.f32 %v818, %v819
      %v821 = vrot.slane %v820, 4
      %v822 = vmin.f32 %v820, %v821
      %v823 = vrot.slane %v822, 2
      %v824 = vmin.f32 %v822, %v823
      %v825 = vrot.slane %v824, 1
      %v826 = vmin.f32 %v824, %v825
      %v827 = vsel %vm261, %v741, inf
      %v828 = vsel %vm261, %v742, inf
      %v829 = vmin.f32 %v827, %v828
      %v830 = vsel %vm261, %v743, inf
      %v831 = vmin.f32 %v829, %v830
      %v832 = vsel %vm261, %v744, inf
      %v833 = vmin.f32 %v831, %v832
      %v834 = vrot.slane %v833, 4
      %v835 = vmin.f32 %v833, %v834
      %v836 = vrot.slane %v835, 2
      %v837 = vmin.f32 %v835, %v836
      %v838 = vrot.slane %v837, 1
      %v839 = vmin.f32 %v837, %v838
      %v840 = vsel %vm261, %v745, inf
      %v841 = vsel %vm261, %v746, inf
      %v842 = vmin.f32 %v840, %v841
      %v843 = vsel %vm261, %v747, inf
      %v844 = vmin.f32 %v842, %v843
      %v845 = vsel %vm261, %v748, inf
      %v846 = vmin.f32 %v844, %v845
      %v847 = vrot.slane %v846, 4
      %v848 = vmin.f32 %v846, %v847
      %v849 = vrot.slane %v848, 2
      %v850 = vmin.f32 %v848, %v849
      %v851 = vrot.slane %v850, 1
      %v852 = vmin.f32 %v850, %v851
      %v861 = vsel %vm699, %v774, %v761
      %v862 = vsel %vm701, %v787, %v861
      %v863 = vsel %vm703, %v800, %v862
      %v864 = vsel %vm705, %v813, %v863
      %v865 = vsel %vm707, %v826, %v864
      %v866 = vsel %vm709, %v839, %v865
      %v867 = vsel %vm711, %v852, %v866
      %v869 = vmin.f32 %v716, %v867
      %870 = vst.msk [vmem:[#allocation4] sm:$0xff] %vm261, %v869
    $region33: #{tpu_custom_call.1} parent=1 // pred_fallthru
      _
    // Predicated region
    $region34: #{tpu_custom_call.1} parent=1 // pred_check
      %p871 = pneg %p203
    $region35: #{tpu_custom_call.1} parent=1 // pred_check_branch
      %873 = sbr.rel (%p871) target = $region37
    $region36: #{tpu_custom_call.1} parent=1 // pred_region
      %v874 = vld [vmem:[#allocation2] sm:$0xff]
      %vm875 = vcmp.gt.f32.partialorder %v874, 0.0
      %v876 = vmax.f32 %v874, 1.0
      %878 = vset.pattern.permute.xlu0 64
      %879 = vperm.xlu0 %878, %v876
      %v880 = vpop.permute.xlu0 %879
      %v882 = vrcp.pop %v880
      %v883 = vmul.f32 %v874, %v882
      %v884 = vmul.f32 %v883, %v883
      %886 = vrot.lane.b32.xlu0 %v884, 32
      %v887 = vpop.permute.xlu0 %886
      %v889 = vsub.f32 %v883, %v887
      %v890 = vmax.f32 %v889, 0.0
      %v891 = vadd.f32 %v890, 1e-05
      %v892 = vrsqrt.pop %v891
      %v893 = vmul.f32 %v891, %v892
      %vm894 = vcmp.eq.f32.partialorder %v891, inf
      %v895 = vsel %vm894, %v891, %v893
      %vm896 = vcmp.eq.f32.partialorder %v891, 0.0
      %v897 = vand.u32 %v891, 2147483648
      %v898 = vsel %vm896, %v897, %v895
      %v899 = vld [vmem:[#allocation3] sm:$0xff]
      %v900 = vsel %vm875, 1, 0
      %901 = vset.pattern.permute.xlu0 64
      %902 = vperm.xlu0 %901, %v900
      %v903 = vpop.permute.xlu0 %902
      %vm904 = vcmp.eq.s32.totalorder %v903, 1
      %v905 = vsel %vm904, %v899, 0.0
      %v906 = vld [vmem:[#allocation4] sm:$0xff]
      %v907 = vsel %vm904, %v906, 0.0
      %909 = vrot.lane.b32.xlu0 %v907, 32
      %v910 = vpop.permute.xlu0 %909
      %913 = vrot.lane.b32.xlu0 %v905, 64
      %v914 = vpop.permute.xlu0 %913
      %917 = vrot.lane.b32.xlu0 %v898, 64
      %v918 = vpop.permute.xlu0 %917
      %vm920 = vcmask 261120
      %v921 = vsel %vm920, %v883, %v910
      %vm922 = vcmask 523264
      %v923 = vsel %vm922, %v921, %v914
      %vm924 = vcmask 785408
      %v925 = vsel %vm924, %v923, %v918
      %v926 = vld [vmem:[#allocation8] sm:$0xff]
      %v927 = vld [vmem:[#allocation8 + $0x8] sm:$0xff]
      %v928 = vld [vmem:[#allocation8 + $0x10] sm:$0xff]
      %v929 = vld [vmem:[#allocation8 + $0x18] sm:$0xff]
      %v930 = vld [vmem:[#allocation8 + $0x20] sm:$0xff]
      %v931 = vld [vmem:[#allocation8 + $0x28] sm:$0xff]
      %v932 = vld [vmem:[#allocation8 + $0x30] sm:$0xff]
      %v933 = vld [vmem:[#allocation8 + $0x38] sm:$0xff]
      %v934 = vld [vmem:[#allocation8 + $0x40] sm:$0xff]
      %v935 = vld [vmem:[#allocation8 + $0x48] sm:$0xff]
      %v936 = vld [vmem:[#allocation8 + $0x50] sm:$0xff]
      %v937 = vld [vmem:[#allocation8 + $0x58] sm:$0xff]
      %v938 = vld [vmem:[#allocation8 + $0x60] sm:$0xff]
      %v939 = vld [vmem:[#allocation8 + $0x68] sm:$0xff]
      %v940 = vld [vmem:[#allocation8 + $0x70] sm:$0xff]
      %v941 = vld [vmem:[#allocation8 + $0x78] sm:$0xff]
      %v942 = vld [vmem:[#allocation8 + $0x80] sm:$0xff]
      %v943 = vld [vmem:[#allocation8 + $0x88] sm:$0xff]
      %v944 = vld [vmem:[#allocation8 + $0x90] sm:$0xff]
      %v945 = vld [vmem:[#allocation8 + $0x98] sm:$0xff]
      %v946 = vld [vmem:[#allocation8 + $0xa0] sm:$0xff]
      %v947 = vld [vmem:[#allocation8 + $0xa8] sm:$0xff]
      %v948 = vld [vmem:[#allocation8 + $0xb0] sm:$0xff]
      %v949 = vld [vmem:[#allocation8 + $0xb8] sm:$0xff]
      %v950 = vld [vmem:[#allocation8 + $0xc0] sm:$0xff]
      %v951 = vld [vmem:[#allocation8 + $0xc8] sm:$0xff]
      %v952 = vld [vmem:[#allocation8 + $0xd0] sm:$0xff]
      %v953 = vld [vmem:[#allocation8 + $0xd8] sm:$0xff]
      %v954 = vld [vmem:[#allocation8 + $0xe0] sm:$0xff]
      %v955 = vld [vmem:[#allocation8 + $0xe8] sm:$0xff]
      %v956 = vld [vmem:[#allocation8 + $0xf0] sm:$0xff]
      %v957 = vld [vmem:[#allocation8 + $0xf8] sm:$0xff]
      %v958 = vld [vmem:[#allocation8 + $0x100] sm:$0xff]
      %v959 = vld [vmem:[#allocation8 + $0x108] sm:$0xff]
      %v960 = vld [vmem:[#allocation8 + $0x110] sm:$0xff]
      %v961 = vld [vmem:[#allocation8 + $0x118] sm:$0xff]
      %v962 = vld [vmem:[#allocation8 + $0x120] sm:$0xff]
      %v963 = vld [vmem:[#allocation8 + $0x128] sm:$0xff]
      %v964 = vld [vmem:[#allocation8 + $0x130] sm:$0xff]
      %v965 = vld [vmem:[#allocation8 + $0x138] sm:$0xff]
      %v966 = vld [vmem:[#allocation8 + $0x140] sm:$0xff]
      %v967 = vld [vmem:[#allocation8 + $0x148] sm:$0xff]
      %v968 = vld [vmem:[#allocation8 + $0x150] sm:$0xff]
      %v969 = vld [vmem:[#allocation8 + $0x158] sm:$0xff]
      %v970 = vld [vmem:[#allocation8 + $0x160] sm:$0xff]
      %v971 = vld [vmem:[#allocation8 + $0x168] sm:$0xff]
      %v972 = vld [vmem:[#allocation8 + $0x170] sm:$0xff]
      %v973 = vld [vmem:[#allocation8 + $0x178] sm:$0xff]
      %974 = vmatprep.subr.mxu0 %v972
      %975 = vmatpush1.msra.mxu0 %v971
      %976 = vmatprep.subr.mxu0 %v969
      %977 = vmatpush1.msra.mxu0 %v968
      %978 = vmatprep.subr.mxu0 %v966
      %979 = vmatpush1.msra.mxu0 %v965
      %980 = vmatprep.subr.mxu0 %v963
      %981 = vmatpush1.msra.mxu0 %v962
      %982 = vmatprep.subr.mxu0 %v960
      %983 = vmatpush1.msra.mxu0 %v959
      %984 = vmatprep.subr.mxu0 %v957
      %985 = vmatpush1.msra.mxu0 %v956
      %986 = vmatprep.subr.mxu0 %v954
      %987 = vmatpush1.msra.mxu0 %v953
      %988 = vmatprep.subr.mxu0 %v951
      %989 = vmatpush1.msra.mxu0 %v950
      %990 = vmatprep.subr.mxu0 %v948
      %991 = vmatpush1.msra.mxu0 %v947
      %992 = vmatprep.subr.mxu0 %v945
      %993 = vmatpush1.msra.mxu0 %v944
      %994 = vmatprep.subr.mxu0 %v942
      %995 = vmatpush1.msra.mxu0 %v941
      %996 = vmatprep.subr.mxu0 %v939
      %997 = vmatpush1.msra.mxu0 %v938
      %998 = vmatprep.subr.mxu0 %v936
      %999 = vmatpush1.msra.mxu0 %v935
      %1000 = vmatprep.subr.mxu0 %v933
      %1001 = vmatpush1.msra.mxu0 %v932
      %1002 = vmatprep.subr.mxu0 %v930
      %1003 = vmatpush1.msra.mxu0 %v929
      %1004 = vmatprep.subr.mxu0 %v927
      %1005 = vmatpush1.msra.mxu0 %v926
      %1006 = vmatprep.subr.mxu0 0.0
      %1007 = vmatpush2.msra.mxu0 0.0
      %1008 = vmatprep.subr.mxu0 0.0
      %1009 = vmatpush2.msra.mxu0 0.0
      %1010 = vmatprep.subr.mxu0 0.0
      %1011 = vmatpush2.msra.mxu0 0.0
      %1012 = vmatprep.subr.mxu0 0.0
      %1013 = vmatpush2.msra.mxu0 0.0
      %1014 = vmatprep.subr.mxu0 0.0
      %1015 = vmatpush2.msra.mxu0 0.0
      %1016 = vmatprep.subr.mxu0 0.0
      %1017 = vmatpush2.msra.mxu0 0.0
      %1018 = vmatprep.subr.mxu0 0.0
      %1019 = vmatpush2.msra.mxu0 0.0
      %1020 = vmatprep.subr.mxu0 0.0
      %1021 = vmatpush2.msra.mxu0 0.0
      %1022 = vmatprep.subr.mxu0 0.0
      %1023 = vmatpush2.msra.mxu0 0.0
      %1024 = vmatprep.subr.mxu0 0.0
      %1025 = vmatpush2.msra.mxu0 0.0
      %1026 = vmatprep.subr.mxu0 0.0
      %1027 = vmatpush2.msra.mxu0 0.0
      %1028 = vmatprep.subr.mxu0 0.0
      %1029 = vmatpush2.msra.mxu0 0.0
      %1030 = vmatprep.subr.mxu0 0.0
      %1031 = vmatpush2.msra.mxu0 0.0
      %1032 = vmatprep.subr.mxu0 0.0
      %1033 = vmatpush2.msra.mxu0 0.0
      %1034 = vmatprep.subr.mxu0 0.0
      %1035 = vmatpush2.msra.mxu0 0.0
      %1036 = vmatprep.subr.mxu0 0.0
      %1037 = vmatpush2.msra.mxu0 0.0
      %1038 = vmatprep.mubr.f32.mxu0 0.0
      %1039 = vmatmul.mubr.f32.gmra.mxu0 %v925
      %v1040 = vpop.f32.mrf.mxu0
      %v1041 = vadd.f32 0.0, %v1040
      %v1042 = vpop.f32.mrf.mxu0
      %v1043 = vadd.f32 0.0, %v1042
      %1044 = vdwg.mxu0
      %1045 = vmatprep.subr.mxu0 0.0
      %1046 = vmatpush1.msra.mxu0 %v973
      %1047 = vmatprep.subr.mxu0 0.0
      %1048 = vmatpush1.msra.mxu0 %v970
      %1049 = vmatprep.subr.mxu0 0.0
      %1050 = vmatpush1.msra.mxu0 %v967
      %1051 = vmatprep.subr.mxu0 0.0
      %1052 = vmatpush1.msra.mxu0 %v964
      %1053 = vmatprep.subr.mxu0 0.0
      %1054 = vmatpush1.msra.mxu0 %v961
      %1055 = vmatprep.subr.mxu0 0.0
      %1056 = vmatpush1.msra.mxu0 %v958
      %1057 = vmatprep.subr.mxu0 0.0
      %1058 = vmatpush1.msra.mxu0 %v955
      %1059 = vmatprep.subr.mxu0 0.0
      %1060 = vmatpush1.msra.mxu0 %v952
      %1061 = vmatprep.subr.mxu0 0.0
      %1062 = vmatpush1.msra.mxu0 %v949
      %1063 = vmatprep.subr.mxu0 0.0
      %1064 = vmatpush1.msra.mxu0 %v946
      %1065 = vmatprep.subr.mxu0 0.0
      %1066 = vmatpush1.msra.mxu0 %v943
      %1067 = vmatprep.subr.mxu0 0.0
      %1068 = vmatpush1.msra.mxu0 %v940
      %1069 = vmatprep.subr.mxu0 0.0
      %1070 = vmatpush1.msra.mxu0 %v937
      %1071 = vmatprep.subr.mxu0 0.0
      %1072 = vmatpush1.msra.mxu0 %v934
      %1073 = vmatprep.subr.mxu0 0.0
      %1074 = vmatpush1.msra.mxu0 %v931
      %1075 = vmatprep.subr.mxu0 0.0
      %1076 = vmatpush1.msra.mxu0 %v928
      %1077 = vmatprep.subr.mxu0 0.0
      %1078 = vmatpush2.msra.mxu0 0.0
      %1079 = vmatprep.subr.mxu0 0.0
      %1080 = vmatpush2.msra.mxu0 0.0
      %1081 = vmatprep.subr.mxu0 0.0
      %1082 = vmatpush2.msra.mxu0 0.0
      %1083 = vmatprep.subr.mxu0 0.0
      %1084 = vmatpush2.msra.mxu0 0.0
      %1085 = vmatprep.subr.mxu0 0.0
      %1086 = vmatpush2.msra.mxu0 0.0
      %1087 = vmatprep.subr.mxu0 0.0
      %1088 = vmatpush2.msra.mxu0 0.0
      %1089 = vmatprep.subr.mxu0 0.0
      %1090 = vmatpush2.msra.mxu0 0.0
      %1091 = vmatprep.subr.mxu0 0.0
      %1092 = vmatpush2.msra.mxu0 0.0
      %1093 = vmatprep.subr.mxu0 0.0
      %1094 = vmatpush2.msra.mxu0 0.0
      %1095 = vmatprep.subr.mxu0 0.0
      %1096 = vmatpush2.msra.mxu0 0.0
      %1097 = vmatprep.subr.mxu0 0.0
      %1098 = vmatpush2.msra.mxu0 0.0
      %1099 = vmatprep.subr.mxu0 0.0
      %1100 = vmatpush2.msra.mxu0 0.0
      %1101 = vmatprep.subr.mxu0 0.0
      %1102 = vmatpush2.msra.mxu0 0.0
      %1103 = vmatprep.subr.mxu0 0.0
      %1104 = vmatpush2.msra.mxu0 0.0
      %1105 = vmatprep.subr.mxu0 0.0
      %1106 = vmatpush2.msra.mxu0 0.0
      %1107 = vmatprep.subr.mxu0 0.0
      %1108 = vmatpush2.msra.mxu0 0.0
      %1109 = vmatprep.mubr.f32.mxu0 0.0
      %1110 = vmatmul.mubr.f32.gmra.mxu0 %v925
      %v1111 = vpop.f32.mrf.mxu0
      %v1112 = vadd.f32 0.0, %v1111
      %v1113 = vpop.f32.mrf.mxu0
      %1114 = vdwg.mxu0
      %v1115 = vadd.f32 %v874, 1.0
      %v1116 = vlog2.pop %v1115
      %v1117 = vmul.f32 %v1116, 0.6931472
      %v1118 = vmul.f32 %v1117, 0.8069024
      %v1119 = vsel %vm875, %v1117, 1.0
      %v1120 = vrcp.pop %v1119
      %v1121 = vmul.f32 1.2393073, %v1120
      %v1122 = vsel %vm875, %v1121, 1.0
      %1124 = vset.pattern.permute.xlu0 64
      %1125 = vperm.xlu0 %1124, %v1118
      %v1126 = vpop.permute.xlu0 %1125
      %v1128 = vmul.f32 %v1126, %v1043
      %v1129 = vadd.f32 %v1041, %v1128
      %1131 = vset.pattern.permute.xlu0 64
      %1132 = vperm.xlu0 %1131, %v1122
      %v1133 = vpop.permute.xlu0 %1132
      %v1135 = vmul.f32 %v1133, %v1112
      %v1136 = vadd.f32 %v1129, %v1135
      %v1137 = vld [vmem:[%s6] sm:$0x1]
      %v1139 = vlaneseq
      %v1140 = vshrl.u32 %v1139, 7
      %v1141 = vsub.s32 0, %v1140
      %v1142 = vrot.slane %v1137, %v1141
      %v1144 = vadd.f32 %v1136, %v1142
      %1145 = vst [vmem:[#allocation11] sm:$0xff] %v1144
    $region37: #{tpu_custom_call.1} parent=1 // pred_fallthru
      _
    // Predicated region
    $region38: #{tpu_custom_call.1} parent=1 // pred_check
      _
    $region39: #{tpu_custom_call.1} parent=1 // pred_check_branch
      %1147 = sbr.rel (0) target = $region41
    $region40: #{tpu_custom_call.1} parent=1 // pred_region
      %s1149 = ssub.s32 128, 128
      %1150 = vsyncadd [#allocation10], %s1149
      %s1152 = sshll.u32 [#allocation11], 4
      %s1153 = int_to_ptr.vmem [resolvable:$true] %s1152
      %1155 = dma.vmem_to_hbm [thread:$0]  %s1153, 128, %s7, [#allocation10]
    $region41: #{tpu_custom_call.1} parent=1 // pred_fallthru
      _
    // Predicated region
    $region42: #{tpu_custom_call.1} parent=1 // pred_check
      _
    $region43: #{tpu_custom_call.1} parent=1 // pred_check_branch
      %1157 = sbr.rel (0) target = $region45
    $region44: #{tpu_custom_call.1} parent=1 // pred_region
      %1158 = dma.done [#allocation10], 128
    $region45: #{tpu_custom_call.1} parent=1 // pred_fallthru
      _
    %1159 = vsyncpa [#allocation9], 1
    %1160 = vsyncpa [#allocation10], 1

</llo_original>
